<compile_context>
chip_gen: v6e
topology: v6e:2x2x1
jax: 0.10.0
libtpu: 0.0.40
codegen_flags: <defaults>
</compile_context>

<pallas_src>
import functools

import jax
import jax.numpy as jnp
from jax import lax
from jax.experimental import pallas as pl
from jax.experimental.pallas import tpu as pltpu


def gru_fc_kernel(ids_ref, emb_ref, wih_ref, whh_ref, bx_ref, bhn_ref,
                  wfc_ref, bfc_ref, out_ref, gx_ref, *,
                  seq_len, batch, hidden_p, vocab_p, unroll):
    """Embedding gather + GRU recurrence + final Linear, fully VMEM-resident.

    ids_ref : (S*Bp, 1)    int32  time-major token ids (padded batch rows use id 0)
    emb_ref : (Vp, E)      bf16   embedding table (rows >= V are zero)
    wih_ref : (E, 3*Hp)    bf16   fused gate-major W_ih^T   [ r | z | n ]
    whh_ref : (Hp, 3*Hp)   bf16   fused gate-major W_hh^T   [ r | z | n ]
    bx_ref  : (1, 3*Hp)    f32    [ b_ir+b_hr | b_iz+b_hz | b_in ]
    bhn_ref : (1, Hp)      f32    b_hn (kept separate: PyTorch scales it by r)
    wfc_ref : (Hp, Op)     bf16   W_fc^T
    bfc_ref : (1, Op)      f32
    out_ref : (Bp, Op)     f32
    gx_ref  : (S*Bp, 3*Hp) f32    scratch: fused hoisted input projections
    """
    # ---- Phase 1: in-kernel embedding gather (one-hot MXU matmul = exact row
    # select) followed by ONE fused wide-N input-projection matmul ------------
    ids = ids_ref[...]                                              # (S*Bp, 1)
    vocab_iota = lax.broadcasted_iota(jnp.int32, (1, vocab_p), 1)   # (1, Vp)
    onehot = (ids == vocab_iota).astype(emb_ref.dtype)              # (S*Bp, Vp)
    x = jnp.dot(onehot, emb_ref[...],
                preferred_element_type=jnp.float32).astype(wih_ref.dtype)
    gx_ref[...] = jnp.dot(x, wih_ref[...],
                          preferred_element_type=jnp.float32) + bx_ref[...]

    # ---- Phase 2: serial recurrence; ONE (Bp,Hp)@(Hp,3*Hp) matmul per step ---
    w_hh = whh_ref[...]
    b_hn = bhn_ref[...]
    h0 = jnp.zeros((batch, hidden_p), jnp.float32)

    # TODO(synk): for larger H/S on v5e, keep W_hh resident in the MXU across
    # steps via pltpu.matmul_push_rhs / matmul_acc_lhs / matmul_pop; not worth
    # it at H=32, S=8.
    def step(t, h):
        row = pl.multiple_of(t * batch, batch)
        gx = gx_ref[pl.ds(row, batch), :]                           # (Bp, 3*Hp)
        # bf16 cast of h compounds <=1-ulp/step rounding on the recurrence;
        # deliberate trade (x-side projection is already bf16), covered by the
        # loosened tolerance vs the f32 reference below.
        gh = jnp.dot(h.astype(w_hh.dtype), w_hh,
                     preferred_element_type=jnp.float32)            # (Bp, 3*Hp)
        r = jax.nn.sigmoid(gx[:, :hidden_p] + gh[:, :hidden_p])
        z = jax.nn.sigmoid(gx[:, hidden_p:2 * hidden_p]
                           + gh[:, hidden_p:2 * hidden_p])
        n = jnp.tanh(gx[:, 2 * hidden_p:] + r * (gh[:, 2 * hidden_p:] + b_hn))
        return (1.0 - z) * n + z * h

    h_last = lax.fori_loop(0, seq_len, step, h0, unroll=unroll)

    # ---- Phase 3: final Linear on last hidden state, lane-dense store -------
    out_ref[...] = (jnp.dot(h_last.astype(wfc_ref.dtype), wfc_ref[...],
                            preferred_element_type=jnp.float32)
                    + bfc_ref[...]).astype(out_ref.dtype)


def _round_up(x, m):
    return (x + m - 1) // m * m


def prepare_params(params):
    """One-time repacking of PyTorch-layout weights into kernel layout.

    Hoisted off the per-call path: gate fusion along N, transposes, lane
    padding and bf16 casts run exactly once; only the token-id layout work
    remains per forward call.
    """
    emb  = params["embedding"]      # (V, E)
    w_ih = params["w_ih"]           # (3H, E)  PyTorch layout, gate order (r, z, n)
    w_hh = params["w_hh"]           # (3H, H)
    b_ih = params["b_ih"]           # (3H,)
    b_hh = params["b_hh"]           # (3H,)
    w_fc = params["w_fc"]           # (O, H)
    b_fc = params["b_fc"]           # (O,)

    V, E = emb.shape
    H = w_hh.shape[1]
    O = w_fc.shape[0]
    Hp = _round_up(H, 128)          # hidden lanes
    Op = _round_up(O, 128)          # output lanes
    Vp = _round_up(V, 8)            # embedding-table sublanes

    def pack_gates(w, in_dim):
        # (3H, in_dim) -> (in_dim, 3*Hp): per-gate W^T, gates fused along N.
        wt = jnp.transpose(w.reshape(3, H, in_dim), (0, 2, 1))      # (3, in, H)
        wt = jnp.pad(wt, ((0, 0), (0, 0), (0, Hp - H)))             # (3, in, Hp)
        return jnp.transpose(wt, (1, 0, 2)).reshape(in_dim, 3 * Hp)

    w_ih_p = pack_gates(w_ih, E)                                    # (E, 3*Hp)
    w_hh_p = jnp.pad(pack_gates(w_hh, H), ((0, Hp - H), (0, 0)))    # (Hp, 3*Hp)

    def pad_h(v):
        return jnp.pad(v.reshape(1, H), ((0, 0), (0, Hp - H)))

    b_ih_g = b_ih.reshape(3, H)
    b_hh_g = b_hh.reshape(3, H)
    # Pre-sum r/z biases (b_ih + b_hh); keep b_hn separate (scaled by r).
    bx = jnp.concatenate([pad_h(b_ih_g[0] + b_hh_g[0]),
                          pad_h(b_ih_g[1] + b_hh_g[1]),
                          pad_h(b_ih_g[2])], axis=1)                # (1, 3*Hp)
    b_hn = pad_h(b_hh_g[2])                                         # (1, Hp)

    w_fc_t = jnp.pad(w_fc.T, ((0, Hp - H), (0, Op - O)))            # (Hp, Op)
    b_fc_p = jnp.pad(b_fc.reshape(1, O), ((0, 0), (0, Op - O)))     # (1, Op)
    emb_p  = jnp.pad(emb, ((0, Vp - V), (0, 0)))                    # (Vp, E)

    mxu = jnp.bfloat16
    return {
        "emb": emb_p.astype(mxu),
        "w_ih": w_ih_p.astype(mxu),
        "w_hh": w_hh_p.astype(mxu),
        "bx": bx.astype(jnp.float32),
        "b_hn": b_hn.astype(jnp.float32),
        "w_fc": w_fc_t.astype(mxu),
        "b_fc": b_fc_p.astype(jnp.float32),
        "dims": (V, E, H, O, Hp, Op, Vp),
    }


def net_forward(x_ids, packed):
    """x_ids: (B, S) int32 token ids. Matches PyTorch Embedding -> GRU -> Linear."""
    V, E, H, O, Hp, Op, Vp = packed["dims"]
    B, S = x_ids.shape
    Bp = _round_up(B, 8)

    # Only per-call host-side work: time-major id layout with padded batch rows
    # (id 0 is a valid row; padded batch rows compute harmlessly and are sliced
    # off). NOTE: out-of-range ids clamp (jnp semantics) instead of erroring.
    ids = jnp.pad(x_ids.T.astype(jnp.int32), ((0, 0), (0, Bp - B)))  # (S, Bp)
    ids = ids.reshape(S * Bp, 1)

    kernel = functools.partial(
        gru_fc_kernel, seq_len=S, batch=Bp, hidden_p=Hp, vocab_p=Vp,
        unroll=min(S, 8))   # cap unroll so long sequences don't blow code size

    vmem = pl.BlockSpec(memory_space=pltpu.MemorySpace.VMEM)

    # Explicit VMEM budget (v7x: 64 MiB physical / 32 MiB default scoped vs
    # 128 MiB on v5e/v6e). Everything here is a few hundred KiB; give 2x
    # headroom for double-buffered input DMAs, floor at 4 MiB.
    operand_bytes = sum(int(a.size) * a.dtype.itemsize
                        for a in (ids, packed["emb"], packed["w_ih"],
                                  packed["w_hh"], packed["bx"], packed["b_hn"],
                                  packed["w_fc"], packed["b_fc"]))
    scratch_bytes = S * Bp * 3 * Hp * 4
    out_bytes = Bp * Op * 4
    vmem_limit = int(max(4 << 20, 2 * (operand_bytes + out_bytes) + scratch_bytes))

    # TODO(synk): for long sequences / large batch, time-chunk the gx slab
    # (pltpu.emit_pipeline with Buffered(2)) so it stays under v7x's 64 MiB
    # VMEM, and shard Bp across the two v7x TensorCores via pl.core_map; at
    # these sizes one un-gridded invocation is optimal on all generations.
    out_padded = pl.pallas_call(
        kernel,
        out_shape=jax.ShapeDtypeStruct((Bp, Op), jnp.float32),
        in_specs=[vmem] * 8,
        out_specs=vmem,
        scratch_shapes=[pltpu.VMEM((S * Bp, 3 * Hp), jnp.float32)],
        compiler_params=pltpu.CompilerParams(vmem_limit_bytes=vmem_limit),
    )(ids, packed["emb"], packed["w_ih"], packed["w_hh"], packed["bx"],
      packed["b_hn"], packed["w_fc"], packed["b_fc"])

    return out_padded[:B, :O]


def reference_forward(x_ids, params):
    """Pure-JAX f32 reference matching PyTorch Embedding -> GRU -> Linear."""
    emb, w_ih, w_hh = params["embedding"], params["w_ih"], params["w_hh"]
    b_ih, b_hh = params["b_ih"], params["b_hh"]
    w_fc, b_fc = params["w_fc"], params["b_fc"]

    B, S = x_ids.shape
    H = w_hh.shape[1]
    xe = jnp.take(emb, x_ids, axis=0)            # (B, S, E)
    h = jnp.zeros((B, H), jnp.float32)
    for t in range(S):
        gx = xe[:, t, :] @ w_ih.T + b_ih
        gh = h @ w_hh.T + b_hh
        xr, xz, xn = gx[:, :H], gx[:, H:2 * H], gx[:, 2 * H:]
        hr, hz, hn = gh[:, :H], gh[:, H:2 * H], gh[:, 2 * H:]
        r = jax.nn.sigmoid(xr + hr)
        z = jax.nn.sigmoid(xz + hz)
        n = jnp.tanh(xn + r * hn)
        h = (1.0 - z) * n + z * h
    return h @ w_fc.T + b_fc


def init_params(key, vocab_size, embedding_dim, hidden_dim, output_dim):
    ks = jax.random.split(key, 7)
    s = 0.1
    return {
        "embedding": jax.random.normal(ks[0], (vocab_size, embedding_dim), jnp.float32),
        "w_ih": s * jax.random.normal(ks[1], (3 * hidden_dim, embedding_dim), jnp.float32),
        "w_hh": s * jax.random.normal(ks[2], (3 * hidden_dim, hidden_dim), jnp.float32),
        "b_ih": s * jax.random.normal(ks[3], (3 * hidden_dim,), jnp.float32),
        "b_hh": s * jax.random.normal(ks[4], (3 * hidden_dim,), jnp.float32),
        "w_fc": s * jax.random.normal(ks[5], (output_dim, hidden_dim), jnp.float32),
        "b_fc": s * jax.random.normal(ks[6], (output_dim,), jnp.float32),
    }


if __name__ == "__main__":
    B, S = 2, 8
    vocab_size, embedding_dim, hidden_dim, output_dim = 20, 16, 32, 10

    key = jax.random.PRNGKey(0)
    kp, kx = jax.random.split(key)
    params = init_params(kp, vocab_size, embedding_dim, hidden_dim, output_dim)
    x_ids = jax.random.randint(kx, (B, S), 0, vocab_size, dtype=jnp.int32)

    packed = jax.tree_util.tree_map(jax.block_until_ready,
                                    prepare_params(params))   # one-time packing
    out = jax.block_until_ready(net_forward(x_ids, packed))
    ref = jax.block_until_ready(reference_forward(x_ids, params))

    assert out.shape == (B, output_dim)
    # bf16 MXU inputs (embedding rows, x-side projection, per-step h cast) ->
    # loosened tolerance vs the f32 reference.
    assert jnp.allclose(out, ref, atol=2e-2, rtol=2e-2), "mismatch vs reference"
    print("KERNEL_OK")
</pallas_src>

<mosaic_0001>
module attributes {stable_mosaic.version = 11 : i64} {
  func.func @gru_fc_kernel(%arg0: memref<64x1xi32, #tpu.memory_space<vmem>>, %arg1: memref<24x16xbf16, #tpu.memory_space<vmem>>, %arg2: memref<16x384xbf16, #tpu.memory_space<vmem>>, %arg3: memref<128x384xbf16, #tpu.memory_space<vmem>>, %arg4: memref<1x384xf32, #tpu.memory_space<vmem>>, %arg5: memref<1x128xf32, #tpu.memory_space<vmem>>, %arg6: memref<128x128xbf16, #tpu.memory_space<vmem>>, %arg7: memref<1x128xf32, #tpu.memory_space<vmem>>, %arg8: memref<8x128xf32, #tpu.memory_space<vmem>>, %arg9: memref<64x384xf32, #tpu.memory_space<vmem>>) attributes {dimension_semantics = [], scalar_prefetch = 0 : i64, scratch_operands = 1 : i64, tpu.core_type = #tpu.core_type<tc>} {
    %c0 = arith.constant 0 : index
    %c0_0 = arith.constant 0 : index
    %0 = vector.load %arg0[%c0, %c0_0] : memref<64x1xi32, #tpu.memory_space<vmem>>, vector<64x1xi32>
    %1 = tpu.iota {dimensions = array<i32: 1>} : vector<1x24xi32>
    %2 = vector.broadcast %0 : vector<64x1xi32> to vector<64x24xi32>
    %3 = vector.broadcast %1 : vector<1x24xi32> to vector<64x24xi32>
    %4 = arith.cmpi eq, %2, %3 : vector<64x24xi32>
    %5 = arith.extui %4 : vector<64x24xi1> to vector<64x24xi32>
    %6 = arith.sitofp %5 : vector<64x24xi32> to vector<64x24xf32>
    %7 = arith.truncf %6 : vector<64x24xf32> to vector<64x24xbf16>
    %c0_1 = arith.constant 0 : index
    %c0_2 = arith.constant 0 : index
    %8 = vector.load %arg1[%c0_1, %c0_2] : memref<24x16xbf16, #tpu.memory_space<vmem>>, vector<24x16xbf16>
    %cst = arith.constant dense<0.000000e+00> : vector<64x16xf32>
    %9 = tpu.matmul %7, %8, %cst {dimension_numbers = #tpu.dot_dimension_numbers<[1], [0], [0], [1], [0, 0, 1, 1], [], []>} : vector<64x24xbf16>, vector<24x16xbf16>, vector<64x16xf32> -> vector<64x16xf32>
    %10 = arith.truncf %9 : vector<64x16xf32> to vector<64x16xbf16>
    %c0_3 = arith.constant 0 : index
    %c0_4 = arith.constant 0 : index
    %11 = vector.load %arg2[%c0_3, %c0_4] : memref<16x384xbf16, #tpu.memory_space<vmem>>, vector<16x384xbf16>
    %cst_5 = arith.constant dense<0.000000e+00> : vector<64x384xf32>
    %12 = tpu.matmul %10, %11, %cst_5 {dimension_numbers = #tpu.dot_dimension_numbers<[1], [0], [0], [1], [0, 0, 1, 1], [], []>} : vector<64x16xbf16>, vector<16x384xbf16>, vector<64x384xf32> -> vector<64x384xf32>
    %c0_6 = arith.constant 0 : index
    %c0_7 = arith.constant 0 : index
    %13 = vector.load %arg4[%c0_6, %c0_7] : memref<1x384xf32, #tpu.memory_space<vmem>>, vector<1x384xf32>
    %14 = vector.broadcast %13 : vector<1x384xf32> to vector<64x384xf32>
    %15 = arith.addf %12, %14 : vector<64x384xf32>
    %c0_8 = arith.constant 0 : index
    %c0_9 = arith.constant 0 : index
    %16 = vector.load %arg9[%c0_8, %c0_9] : memref<64x384xf32, #tpu.memory_space<vmem>>, vector<64x384xf32>
    tpu.vector_store %arg9[%c0_8, %c0_9], %15 {strides = array<i32>} : memref<64x384xf32, #tpu.memory_space<vmem>>, vector<64x384xf32>,
    %c0_10 = arith.constant 0 : index
    %c0_11 = arith.constant 0 : index
    %17 = vector.load %arg3[%c0_10, %c0_11] : memref<128x384xbf16, #tpu.memory_space<vmem>>, vector<128x384xbf16>
    %c0_12 = arith.constant 0 : index
    %c0_13 = arith.constant 0 : index
    %18 = vector.load %arg5[%c0_12, %c0_13] : memref<1x128xf32, #tpu.memory_space<vmem>>, vector<1x128xf32>
    %cst_14 = arith.constant 0.000000e+00 : f32
    %19 = vector.broadcast %cst_14 : f32 to vector<8x128xf32>
    %c0_i32 = arith.constant 0 : i32
    %c8_i32 = arith.constant 8 : i32
    %20 = arith.muli %c0_i32, %c8_i32 : i32
    %21 = tpu.assume_multiple %20, 8 : i32
    %22 = arith.index_cast %21 : i32 to index
    %c0_15 = arith.constant 0 : index
    %23 = vector.load %arg9[%22, %c0_15] : memref<64x384xf32, #tpu.memory_space<vmem>>, vector<8x384xf32>
    %24 = arith.truncf %19 : vector<8x128xf32> to vector<8x128xbf16>
    %cst_16 = arith.constant dense<0.000000e+00> : vector<8x384xf32>
    %25 = tpu.matmul %24, %17, %cst_16 {dimension_numbers = #tpu.dot_dimension_numbers<[1], [0], [0], [1], [0, 0, 1, 1], [], []>} : vector<8x128xbf16>, vector<128x384xbf16>, vector<8x384xf32> -> vector<8x384xf32>
    %26 = vector.extract_strided_slice %23 {offsets = [0, 0], sizes = [8, 128], strides = [1, 1]} : vector<8x384xf32> to vector<8x128xf32>
    %27 = vector.extract_strided_slice %25 {offsets = [0, 0], sizes = [8, 128], strides = [1, 1]} : vector<8x384xf32> to vector<8x128xf32>
    %28 = arith.addf %26, %27 : vector<8x128xf32>
    %29 = arith.negf %28 : vector<8x128xf32>
    %30 = math.exp %29 : vector<8x128xf32>
    %cst_17 = arith.constant 1.000000e+00 : f32
    %31 = vector.broadcast %cst_17 : f32 to vector<8x128xf32>
    %32 = arith.addf %31, %30 : vector<8x128xf32>
    %33 = arith.divf %31, %32 : vector<8x128xf32>
    %34 = vector.extract_strided_slice %23 {offsets = [0, 128], sizes = [8, 128], strides = [1, 1]} : vector<8x384xf32> to vector<8x128xf32>
    %35 = vector.extract_strided_slice %25 {offsets = [0, 128], sizes = [8, 128], strides = [1, 1]} : vector<8x384xf32> to vector<8x128xf32>
    %36 = arith.addf %34, %35 : vector<8x128xf32>
    %37 = arith.negf %36 : vector<8x128xf32>
    %38 = math.exp %37 : vector<8x128xf32>
    %cst_18 = arith.constant 1.000000e+00 : f32
    %39 = vector.broadcast %cst_18 : f32 to vector<8x128xf32>
    %40 = arith.addf %39, %38 : vector<8x128xf32>
    %41 = arith.divf %39, %40 : vector<8x128xf32>
    %42 = vector.extract_strided_slice %23 {offsets = [0, 256], sizes = [8, 128], strides = [1, 1]} : vector<8x384xf32> to vector<8x128xf32>
    %43 = vector.extract_strided_slice %25 {offsets = [0, 256], sizes = [8, 128], strides = [1, 1]} : vector<8x384xf32> to vector<8x128xf32>
    %44 = vector.broadcast %18 : vector<1x128xf32> to vector<8x128xf32>
    %45 = arith.addf %43, %44 : vector<8x128xf32>
    %46 = arith.mulf %33, %45 : vector<8x128xf32>
    %47 = arith.addf %42, %46 : vector<8x128xf32>
    %48 = math.tanh %47 : vector<8x128xf32>
    %cst_19 = arith.constant 1.000000e+00 : f32
    %49 = vector.broadcast %cst_19 : f32 to vector<8x128xf32>
    %50 = arith.subf %49, %41 : vector<8x128xf32>
    %51 = arith.mulf %50, %48 : vector<8x128xf32>
    %52 = arith.mulf %41, %19 : vector<8x128xf32>
    %53 = arith.addf %51, %52 : vector<8x128xf32>
    %c1_i32 = arith.constant 1 : i32
    %c8_i32_20 = arith.constant 8 : i32
    %54 = arith.muli %c1_i32, %c8_i32_20 : i32
    %55 = tpu.assume_multiple %54, 8 : i32
    %56 = arith.index_cast %55 : i32 to index
    %c0_21 = arith.constant 0 : index
    %57 = vector.load %arg9[%56, %c0_21] : memref<64x384xf32, #tpu.memory_space<vmem>>, vector<8x384xf32>
    %58 = arith.truncf %53 : vector<8x128xf32> to vector<8x128xbf16>
    %cst_22 = arith.constant dense<0.000000e+00> : vector<8x384xf32>
    %59 = tpu.matmul %58, %17, %cst_22 {dimension_numbers = #tpu.dot_dimension_numbers<[1], [0], [0], [1], [0, 0, 1, 1], [], []>} : vector<8x128xbf16>, vector<128x384xbf16>, vector<8x384xf32> -> vector<8x384xf32>
    %60 = vector.extract_strided_slice %57 {offsets = [0, 0], sizes = [8, 128], strides = [1, 1]} : vector<8x384xf32> to vector<8x128xf32>
    %61 = vector.extract_strided_slice %59 {offsets = [0, 0], sizes = [8, 128], strides = [1, 1]} : vector<8x384xf32> to vector<8x128xf32>
    %62 = arith.addf %60, %61 : vector<8x128xf32>
    %63 = arith.negf %62 : vector<8x128xf32>
    %64 = math.exp %63 : vector<8x128xf32>
    %cst_23 = arith.constant 1.000000e+00 : f32
    %65 = vector.broadcast %cst_23 : f32 to vector<8x128xf32>
    %66 = arith.addf %65, %64 : vector<8x128xf32>
    %67 = arith.divf %65, %66 : vector<8x128xf32>
    %68 = vector.extract_strided_slice %57 {offsets = [0, 128], sizes = [8, 128], strides = [1, 1]} : vector<8x384xf32> to vector<8x128xf32>
    %69 = vector.extract_strided_slice %59 {offsets = [0, 128], sizes = [8, 128], strides = [1, 1]} : vector<8x384xf32> to vector<8x128xf32>
    %70 = arith.addf %68, %69 : vector<8x128xf32>
    %71 = arith.negf %70 : vector<8x128xf32>
    %72 = math.exp %71 : vector<8x128xf32>
    %cst_24 = arith.constant 1.000000e+00 : f32
    %73 = vector.broadcast %cst_24 : f32 to vector<8x128xf32>
    %74 = arith.addf %73, %72 : vector<8x128xf32>
    %75 = arith.divf %73, %74 : vector<8x128xf32>
    %76 = vector.extract_strided_slice %57 {offsets = [0, 256], sizes = [8, 128], strides = [1, 1]} : vector<8x384xf32> to vector<8x128xf32>
    %77 = vector.extract_strided_slice %59 {offsets = [0, 256], sizes = [8, 128], strides = [1, 1]} : vector<8x384xf32> to vector<8x128xf32>
    %78 = vector.broadcast %18 : vector<1x128xf32> to vector<8x128xf32>
    %79 = arith.addf %77, %78 : vector<8x128xf32>
    %80 = arith.mulf %67, %79 : vector<8x128xf32>
    %81 = arith.addf %76, %80 : vector<8x128xf32>
    %82 = math.tanh %81 : vector<8x128xf32>
    %cst_25 = arith.constant 1.000000e+00 : f32
    %83 = vector.broadcast %cst_25 : f32 to vector<8x128xf32>
    %84 = arith.subf %83, %75 : vector<8x128xf32>
    %85 = arith.mulf %84, %82 : vector<8x128xf32>
    %86 = arith.mulf %75, %53 : vector<8x128xf32>
    %87 = arith.addf %85, %86 : vector<8x128xf32>
    %c2_i32 = arith.constant 2 : i32
    %c8_i32_26 = arith.constant 8 : i32
    %88 = arith.muli %c2_i32, %c8_i32_26 : i32
    %89 = tpu.assume_multiple %88, 8 : i32
    %90 = arith.index_cast %89 : i32 to index
    %c0_27 = arith.constant 0 : index
    %91 = vector.load %arg9[%90, %c0_27] : memref<64x384xf32, #tpu.memory_space<vmem>>, vector<8x384xf32>
    %92 = arith.truncf %87 : vector<8x128xf32> to vector<8x128xbf16>
    %cst_28 = arith.constant dense<0.000000e+00> : vector<8x384xf32>
    %93 = tpu.matmul %92, %17, %cst_28 {dimension_numbers = #tpu.dot_dimension_numbers<[1], [0], [0], [1], [0, 0, 1, 1], [], []>} : vector<8x128xbf16>, vector<128x384xbf16>, vector<8x384xf32> -> vector<8x384xf32>
    %94 = vector.extract_strided_slice %91 {offsets = [0, 0], sizes = [8, 128], strides = [1, 1]} : vector<8x384xf32> to vector<8x128xf32>
    %95 = vector.extract_strided_slice %93 {offsets = [0, 0], sizes = [8, 128], strides = [1, 1]} : vector<8x384xf32> to vector<8x128xf32>
    %96 = arith.addf %94, %95 : vector<8x128xf32>
    %97 = arith.negf %96 : vector<8x128xf32>
    %98 = math.exp %97 : vector<8x128xf32>
    %cst_29 = arith.constant 1.000000e+00 : f32
    %99 = vector.broadcast %cst_29 : f32 to vector<8x128xf32>
    %100 = arith.addf %99, %98 : vector<8x128xf32>
    %101 = arith.divf %99, %100 : vector<8x128xf32>
    %102 = vector.extract_strided_slice %91 {offsets = [0, 128], sizes = [8, 128], strides = [1, 1]} : vector<8x384xf32> to vector<8x128xf32>
    %103 = vector.extract_strided_slice %93 {offsets = [0, 128], sizes = [8, 128], strides = [1, 1]} : vector<8x384xf32> to vector<8x128xf32>
    %104 = arith.addf %102, %103 : vector<8x128xf32>
    %105 = arith.negf %104 : vector<8x128xf32>
    %106 = math.exp %105 : vector<8x128xf32>
    %cst_30 = arith.constant 1.000000e+00 : f32
    %107 = vector.broadcast %cst_30 : f32 to vector<8x128xf32>
    %108 = arith.addf %107, %106 : vector<8x128xf32>
    %109 = arith.divf %107, %108 : vector<8x128xf32>
    %110 = vector.extract_strided_slice %91 {offsets = [0, 256], sizes = [8, 128], strides = [1, 1]} : vector<8x384xf32> to vector<8x128xf32>
    %111 = vector.extract_strided_slice %93 {offsets = [0, 256], sizes = [8, 128], strides = [1, 1]} : vector<8x384xf32> to vector<8x128xf32>
    %112 = vector.broadcast %18 : vector<1x128xf32> to vector<8x128xf32>
    %113 = arith.addf %111, %112 : vector<8x128xf32>
    %114 = arith.mulf %101, %113 : vector<8x128xf32>
    %115 = arith.addf %110, %114 : vector<8x128xf32>
    %116 = math.tanh %115 : vector<8x128xf32>
    %cst_31 = arith.constant 1.000000e+00 : f32
    %117 = vector.broadcast %cst_31 : f32 to vector<8x128xf32>
    %118 = arith.subf %117, %109 : vector<8x128xf32>
    %119 = arith.mulf %118, %116 : vector<8x128xf32>
    %120 = arith.mulf %109, %87 : vector<8x128xf32>
    %121 = arith.addf %119, %120 : vector<8x128xf32>
    %c3_i32 = arith.constant 3 : i32
    %c8_i32_32 = arith.constant 8 : i32
    %122 = arith.muli %c3_i32, %c8_i32_32 : i32
    %123 = tpu.assume_multiple %122, 8 : i32
    %124 = arith.index_cast %123 : i32 to index
    %c0_33 = arith.constant 0 : index
    %125 = vector.load %arg9[%124, %c0_33] : memref<64x384xf32, #tpu.memory_space<vmem>>, vector<8x384xf32>
    %126 = arith.truncf %121 : vector<8x128xf32> to vector<8x128xbf16>
    %cst_34 = arith.constant dense<0.000000e+00> : vector<8x384xf32>
    %127 = tpu.matmul %126, %17, %cst_34 {dimension_numbers = #tpu.dot_dimension_numbers<[1], [0], [0], [1], [0, 0, 1, 1], [], []>} : vector<8x128xbf16>, vector<128x384xbf16>, vector<8x384xf32> -> vector<8x384xf32>
    %128 = vector.extract_strided_slice %125 {offsets = [0, 0], sizes = [8, 128], strides = [1, 1]} : vector<8x384xf32> to vector<8x128xf32>
    %129 = vector.extract_strided_slice %127 {offsets = [0, 0], sizes = [8, 128], strides = [1, 1]} : vector<8x384xf32> to vector<8x128xf32>
    %130 = arith.addf %128, %129 : vector<8x128xf32>
    %131 = arith.negf %130 : vector<8x128xf32>
    %132 = math.exp %131 : vector<8x128xf32>
    %cst_35 = arith.constant 1.000000e+00 : f32
    %133 = vector.broadcast %cst_35 : f32 to vector<8x128xf32>
    %134 = arith.addf %133, %132 : vector<8x128xf32>
    %135 = arith.divf %133, %134 : vector<8x128xf32>
    %136 = vector.extract_strided_slice %125 {offsets = [0, 128], sizes = [8, 128], strides = [1, 1]} : vector<8x384xf32> to vector<8x128xf32>
    %137 = vector.extract_strided_slice %127 {offsets = [0, 128], sizes = [8, 128], strides = [1, 1]} : vector<8x384xf32> to vector<8x128xf32>
    %138 = arith.addf %136, %137 : vector<8x128xf32>
    %139 = arith.negf %138 : vector<8x128xf32>
    %140 = math.exp %139 : vector<8x128xf32>
    %cst_36 = arith.constant 1.000000e+00 : f32
    %141 = vector.broadcast %cst_36 : f32 to vector<8x128xf32>
    %142 = arith.addf %141, %140 : vector<8x128xf32>
    %143 = arith.divf %141, %142 : vector<8x128xf32>
    %144 = vector.extract_strided_slice %125 {offsets = [0, 256], sizes = [8, 128], strides = [1, 1]} : vector<8x384xf32> to vector<8x128xf32>
    %145 = vector.extract_strided_slice %127 {offsets = [0, 256], sizes = [8, 128], strides = [1, 1]} : vector<8x384xf32> to vector<8x128xf32>
    %146 = vector.broadcast %18 : vector<1x128xf32> to vector<8x128xf32>
    %147 = arith.addf %145, %146 : vector<8x128xf32>
    %148 = arith.mulf %135, %147 : vector<8x128xf32>
    %149 = arith.addf %144, %148 : vector<8x128xf32>
    %150 = math.tanh %149 : vector<8x128xf32>
    %cst_37 = arith.constant 1.000000e+00 : f32
    %151 = vector.broadcast %cst_37 : f32 to vector<8x128xf32>
    %152 = arith.subf %151, %143 : vector<8x128xf32>
    %153 = arith.mulf %152, %150 : vector<8x128xf32>
    %154 = arith.mulf %143, %121 : vector<8x128xf32>
    %155 = arith.addf %153, %154 : vector<8x128xf32>
    %c4_i32 = arith.constant 4 : i32
    %c8_i32_38 = arith.constant 8 : i32
    %156 = arith.muli %c4_i32, %c8_i32_38 : i32
    %157 = tpu.assume_multiple %156, 8 : i32
    %158 = arith.index_cast %157 : i32 to index
    %c0_39 = arith.constant 0 : index
    %159 = vector.load %arg9[%158, %c0_39] : memref<64x384xf32, #tpu.memory_space<vmem>>, vector<8x384xf32>
    %160 = arith.truncf %155 : vector<8x128xf32> to vector<8x128xbf16>
    %cst_40 = arith.constant dense<0.000000e+00> : vector<8x384xf32>
    %161 = tpu.matmul %160, %17, %cst_40 {dimension_numbers = #tpu.dot_dimension_numbers<[1], [0], [0], [1], [0, 0, 1, 1], [], []>} : vector<8x128xbf16>, vector<128x384xbf16>, vector<8x384xf32> -> vector<8x384xf32>
    %162 = vector.extract_strided_slice %159 {offsets = [0, 0], sizes = [8, 128], strides = [1, 1]} : vector<8x384xf32> to vector<8x128xf32>
    %163 = vector.extract_strided_slice %161 {offsets = [0, 0], sizes = [8, 128], strides = [1, 1]} : vector<8x384xf32> to vector<8x128xf32>
    %164 = arith.addf %162, %163 : vector<8x128xf32>
    %165 = arith.negf %164 : vector<8x128xf32>
    %166 = math.exp %165 : vector<8x128xf32>
    %cst_41 = arith.constant 1.000000e+00 : f32
    %167 = vector.broadcast %cst_41 : f32 to vector<8x128xf32>
    %168 = arith.addf %167, %166 : vector<8x128xf32>
    %169 = arith.divf %167, %168 : vector<8x128xf32>
    %170 = vector.extract_strided_slice %159 {offsets = [0, 128], sizes = [8, 128], strides = [1, 1]} : vector<8x384xf32> to vector<8x128xf32>
    %171 = vector.extract_strided_slice %161 {offsets = [0, 128], sizes = [8, 128], strides = [1, 1]} : vector<8x384xf32> to vector<8x128xf32>
    %172 = arith.addf %170, %171 : vector<8x128xf32>
    %173 = arith.negf %172 : vector<8x128xf32>
    %174 = math.exp %173 : vector<8x128xf32>
    %cst_42 = arith.constant 1.000000e+00 : f32
    %175 = vector.broadcast %cst_42 : f32 to vector<8x128xf32>
    %176 = arith.addf %175, %174 : vector<8x128xf32>
    %177 = arith.divf %175, %176 : vector<8x128xf32>
    %178 = vector.extract_strided_slice %159 {offsets = [0, 256], sizes = [8, 128], strides = [1, 1]} : vector<8x384xf32> to vector<8x128xf32>
    %179 = vector.extract_strided_slice %161 {offsets = [0, 256], sizes = [8, 128], strides = [1, 1]} : vector<8x384xf32> to vector<8x128xf32>
    %180 = vector.broadcast %18 : vector<1x128xf32> to vector<8x128xf32>
    %181 = arith.addf %179, %180 : vector<8x128xf32>
    %182 = arith.mulf %169, %181 : vector<8x128xf32>
    %183 = arith.addf %178, %182 : vector<8x128xf32>
    %184 = math.tanh %183 : vector<8x128xf32>
    %cst_43 = arith.constant 1.000000e+00 : f32
    %185 = vector.broadcast %cst_43 : f32 to vector<8x128xf32>
    %186 = arith.subf %185, %177 : vector<8x128xf32>
    %187 = arith.mulf %186, %184 : vector<8x128xf32>
    %188 = arith.mulf %177, %155 : vector<8x128xf32>
    %189 = arith.addf %187, %188 : vector<8x128xf32>
    %c5_i32 = arith.constant 5 : i32
    %c8_i32_44 = arith.constant 8 : i32
    %190 = arith.muli %c5_i32, %c8_i32_44 : i32
    %191 = tpu.assume_multiple %190, 8 : i32
    %192 = arith.index_cast %191 : i32 to index
    %c0_45 = arith.constant 0 : index
    %193 = vector.load %arg9[%192, %c0_45] : memref<64x384xf32, #tpu.memory_space<vmem>>, vector<8x384xf32>
    %194 = arith.truncf %189 : vector<8x128xf32> to vector<8x128xbf16>
    %cst_46 = arith.constant dense<0.000000e+00> : vector<8x384xf32>
    %195 = tpu.matmul %194, %17, %cst_46 {dimension_numbers = #tpu.dot_dimension_numbers<[1], [0], [0], [1], [0, 0, 1, 1], [], []>} : vector<8x128xbf16>, vector<128x384xbf16>, vector<8x384xf32> -> vector<8x384xf32>
    %196 = vector.extract_strided_slice %193 {offsets = [0, 0], sizes = [8, 128], strides = [1, 1]} : vector<8x384xf32> to vector<8x128xf32>
    %197 = vector.extract_strided_slice %195 {offsets = [0, 0], sizes = [8, 128], strides = [1, 1]} : vector<8x384xf32> to vector<8x128xf32>
    %198 = arith.addf %196, %197 : vector<8x128xf32>
    %199 = arith.negf %198 : vector<8x128xf32>
    %200 = math.exp %199 : vector<8x128xf32>
    %cst_47 = arith.constant 1.000000e+00 : f32
    %201 = vector.broadcast %cst_47 : f32 to vector<8x128xf32>
    %202 = arith.addf %201, %200 : vector<8x128xf32>
    %203 = arith.divf %201, %202 : vector<8x128xf32>
    %204 = vector.extract_strided_slice %193 {offsets = [0, 128], sizes = [8, 128], strides = [1, 1]} : vector<8x384xf32> to vector<8x128xf32>
    %205 = vector.extract_strided_slice %195 {offsets = [0, 128], sizes = [8, 128], strides = [1, 1]} : vector<8x384xf32> to vector<8x128xf32>
    %206 = arith.addf %204, %205 : vector<8x128xf32>
    %207 = arith.negf %206 : vector<8x128xf32>
    %208 = math.exp %207 : vector<8x128xf32>
    %cst_48 = arith.constant 1.000000e+00 : f32
    %209 = vector.broadcast %cst_48 : f32 to vector<8x128xf32>
    %210 = arith.addf %209, %208 : vector<8x128xf32>
    %211 = arith.divf %209, %210 : vector<8x128xf32>
    %212 = vector.extract_strided_slice %193 {offsets = [0, 256], sizes = [8, 128], strides = [1, 1]} : vector<8x384xf32> to vector<8x128xf32>
    %213 = vector.extract_strided_slice %195 {offsets = [0, 256], sizes = [8, 128], strides = [1, 1]} : vector<8x384xf32> to vector<8x128xf32>
    %214 = vector.broadcast %18 : vector<1x128xf32> to vector<8x128xf32>
    %215 = arith.addf %213, %214 : vector<8x128xf32>
    %216 = arith.mulf %203, %215 : vector<8x128xf32>
    %217 = arith.addf %212, %216 : vector<8x128xf32>
    %218 = math.tanh %217 : vector<8x128xf32>
    %cst_49 = arith.constant 1.000000e+00 : f32
    %219 = vector.broadcast %cst_49 : f32 to vector<8x128xf32>
    %220 = arith.subf %219, %211 : vector<8x128xf32>
    %221 = arith.mulf %220, %218 : vector<8x128xf32>
    %222 = arith.mulf %211, %189 : vector<8x128xf32>
    %223 = arith.addf %221, %222 : vector<8x128xf32>
    %c6_i32 = arith.constant 6 : i32
    %c8_i32_50 = arith.constant 8 : i32
    %224 = arith.muli %c6_i32, %c8_i32_50 : i32
    %225 = tpu.assume_multiple %224, 8 : i32
    %226 = arith.index_cast %225 : i32 to index
    %c0_51 = arith.constant 0 : index
    %227 = vector.load %arg9[%226, %c0_51] : memref<64x384xf32, #tpu.memory_space<vmem>>, vector<8x384xf32>
    %228 = arith.truncf %223 : vector<8x128xf32> to vector<8x128xbf16>
    %cst_52 = arith.constant dense<0.000000e+00> : vector<8x384xf32>
    %229 = tpu.matmul %228, %17, %cst_52 {dimension_numbers = #tpu.dot_dimension_numbers<[1], [0], [0], [1], [0, 0, 1, 1], [], []>} : vector<8x128xbf16>, vector<128x384xbf16>, vector<8x384xf32> -> vector<8x384xf32>
    %230 = vector.extract_strided_slice %227 {offsets = [0, 0], sizes = [8, 128], strides = [1, 1]} : vector<8x384xf32> to vector<8x128xf32>
    %231 = vector.extract_strided_slice %229 {offsets = [0, 0], sizes = [8, 128], strides = [1, 1]} : vector<8x384xf32> to vector<8x128xf32>
    %232 = arith.addf %230, %231 : vector<8x128xf32>
    %233 = arith.negf %232 : vector<8x128xf32>
    %234 = math.exp %233 : vector<8x128xf32>
    %cst_53 = arith.constant 1.000000e+00 : f32
    %235 = vector.broadcast %cst_53 : f32 to vector<8x128xf32>
    %236 = arith.addf %235, %234 : vector<8x128xf32>
    %237 = arith.divf %235, %236 : vector<8x128xf32>
    %238 = vector.extract_strided_slice %227 {offsets = [0, 128], sizes = [8, 128], strides = [1, 1]} : vector<8x384xf32> to vector<8x128xf32>
    %239 = vector.extract_strided_slice %229 {offsets = [0, 128], sizes = [8, 128], strides = [1, 1]} : vector<8x384xf32> to vector<8x128xf32>
    %240 = arith.addf %238, %239 : vector<8x128xf32>
    %241 = arith.negf %240 : vector<8x128xf32>
    %242 = math.exp %241 : vector<8x128xf32>
    %cst_54 = arith.constant 1.000000e+00 : f32
    %243 = vector.broadcast %cst_54 : f32 to vector<8x128xf32>
    %244 = arith.addf %243, %242 : vector<8x128xf32>
    %245 = arith.divf %243, %244 : vector<8x128xf32>
    %246 = vector.extract_strided_slice %227 {offsets = [0, 256], sizes = [8, 128], strides = [1, 1]} : vector<8x384xf32> to vector<8x128xf32>
    %247 = vector.extract_strided_slice %229 {offsets = [0, 256], sizes = [8, 128], strides = [1, 1]} : vector<8x384xf32> to vector<8x128xf32>
    %248 = vector.broadcast %18 : vector<1x128xf32> to vector<8x128xf32>
    %249 = arith.addf %247, %248 : vector<8x128xf32>
    %250 = arith.mulf %237, %249 : vector<8x128xf32>
    %251 = arith.addf %246, %250 : vector<8x128xf32>
    %252 = math.tanh %251 : vector<8x128xf32>
    %cst_55 = arith.constant 1.000000e+00 : f32
    %253 = vector.broadcast %cst_55 : f32 to vector<8x128xf32>
    %254 = arith.subf %253, %245 : vector<8x128xf32>
    %255 = arith.mulf %254, %252 : vector<8x128xf32>
    %256 = arith.mulf %245, %223 : vector<8x128xf32>
    %257 = arith.addf %255, %256 : vector<8x128xf32>
    %c7_i32 = arith.constant 7 : i32
    %c8_i32_56 = arith.constant 8 : i32
    %258 = arith.muli %c7_i32, %c8_i32_56 : i32
    %259 = tpu.assume_multiple %258, 8 : i32
    %260 = arith.index_cast %259 : i32 to index
    %c0_57 = arith.constant 0 : index
    %261 = vector.load %arg9[%260, %c0_57] : memref<64x384xf32, #tpu.memory_space<vmem>>, vector<8x384xf32>
    %262 = arith.truncf %257 : vector<8x128xf32> to vector<8x128xbf16>
    %cst_58 = arith.constant dense<0.000000e+00> : vector<8x384xf32>
    %263 = tpu.matmul %262, %17, %cst_58 {dimension_numbers = #tpu.dot_dimension_numbers<[1], [0], [0], [1], [0, 0, 1, 1], [], []>} : vector<8x128xbf16>, vector<128x384xbf16>, vector<8x384xf32> -> vector<8x384xf32>
    %264 = vector.extract_strided_slice %261 {offsets = [0, 0], sizes = [8, 128], strides = [1, 1]} : vector<8x384xf32> to vector<8x128xf32>
    %265 = vector.extract_strided_slice %263 {offsets = [0, 0], sizes = [8, 128], strides = [1, 1]} : vector<8x384xf32> to vector<8x128xf32>
    %266 = arith.addf %264, %265 : vector<8x128xf32>
    %267 = arith.negf %266 : vector<8x128xf32>
    %268 = math.exp %267 : vector<8x128xf32>
    %cst_59 = arith.constant 1.000000e+00 : f32
    %269 = vector.broadcast %cst_59 : f32 to vector<8x128xf32>
    %270 = arith.addf %269, %268 : vector<8x128xf32>
    %271 = arith.divf %269, %270 : vector<8x128xf32>
    %272 = vector.extract_strided_slice %261 {offsets = [0, 128], sizes = [8, 128], strides = [1, 1]} : vector<8x384xf32> to vector<8x128xf32>
    %273 = vector.extract_strided_slice %263 {offsets = [0, 128], sizes = [8, 128], strides = [1, 1]} : vector<8x384xf32> to vector<8x128xf32>
    %274 = arith.addf %272, %273 : vector<8x128xf32>
    %275 = arith.negf %274 : vector<8x128xf32>
    %276 = math.exp %275 : vector<8x128xf32>
    %cst_60 = arith.constant 1.000000e+00 : f32
    %277 = vector.broadcast %cst_60 : f32 to vector<8x128xf32>
    %278 = arith.addf %277, %276 : vector<8x128xf32>
    %279 = arith.divf %277, %278 : vector<8x128xf32>
    %280 = vector.extract_strided_slice %261 {offsets = [0, 256], sizes = [8, 128], strides = [1, 1]} : vector<8x384xf32> to vector<8x128xf32>
    %281 = vector.extract_strided_slice %263 {offsets = [0, 256], sizes = [8, 128], strides = [1, 1]} : vector<8x384xf32> to vector<8x128xf32>
    %282 = vector.broadcast %18 : vector<1x128xf32> to vector<8x128xf32>
    %283 = arith.addf %281, %282 : vector<8x128xf32>
    %284 = arith.mulf %271, %283 : vector<8x128xf32>
    %285 = arith.addf %280, %284 : vector<8x128xf32>
    %286 = math.tanh %285 : vector<8x128xf32>
    %cst_61 = arith.constant 1.000000e+00 : f32
    %287 = vector.broadcast %cst_61 : f32 to vector<8x128xf32>
    %288 = arith.subf %287, %279 : vector<8x128xf32>
    %289 = arith.mulf %288, %286 : vector<8x128xf32>
    %290 = arith.mulf %279, %257 : vector<8x128xf32>
    %291 = arith.addf %289, %290 : vector<8x128xf32>
    %c8_i32_62 = arith.constant 8 : i32
    %292 = arith.truncf %291 : vector<8x128xf32> to vector<8x128xbf16>
    %c0_63 = arith.constant 0 : index
    %c0_64 = arith.constant 0 : index
    %293 = vector.load %arg6[%c0_63, %c0_64] : memref<128x128xbf16, #tpu.memory_space<vmem>>, vector<128x128xbf16>
    %cst_65 = arith.constant dense<0.000000e+00> : vector<8x128xf32>
    %294 = tpu.matmul %292, %293, %cst_65 {dimension_numbers = #tpu.dot_dimension_numbers<[1], [0], [0], [1], [0, 0, 1, 1], [], []>} : vector<8x128xbf16>, vector<128x128xbf16>, vector<8x128xf32> -> vector<8x128xf32>
    %c0_66 = arith.constant 0 : index
    %c0_67 = arith.constant 0 : index
    %295 = vector.load %arg7[%c0_66, %c0_67] : memref<1x128xf32, #tpu.memory_space<vmem>>, vector<1x128xf32>
    %296 = vector.broadcast %295 : vector<1x128xf32> to vector<8x128xf32>
    %297 = arith.addf %294, %296 : vector<8x128xf32>
    %c0_68 = arith.constant 0 : index
    %c0_69 = arith.constant 0 : index
    %298 = vector.load %arg8[%c0_68, %c0_69] : memref<8x128xf32, #tpu.memory_space<vmem>>, vector<8x128xf32>
    tpu.vector_store %arg8[%c0_68, %c0_69], %297 {strides = array<i32>} : memref<8x128xf32, #tpu.memory_space<vmem>>, vector<8x128xf32>,
    return
  }
}

</mosaic_0001>

<llo_original>
// kernel: tpu_custom_call.1
$region0: #{tpu_custom_call.1}
  #allocation0 [shape = 'u32[]', space=smem, size = 0x4, offset = 0x4, fixed_abs, tag = 'smem constant byte address 0x4 - core index']
  #allocation1 [shape = 'u32[144,128]{1,0:T(1,128)}', space=vmem, size = 0x12000, scoped, tag = 'internal scratch']
  #allocation2 [shape = 'f32[64,384]{1,0:T(8,128)}', space=vmem, size = 0x18000, scoped, tag = 'scratch operand']
  %s0 = inlined_call_operand.vmem [shape: s32[64,1], index: 0, kind: input, shape index: {}]
  %s1 = inlined_call_operand.vmem [shape: bf16[24,16], index: 1, kind: input, shape index: {}]
  %s2 = inlined_call_operand.vmem [shape: bf16[16,384], index: 2, kind: input, shape index: {}]
  %s3 = inlined_call_operand.hbm [shape: bf16[128,384], index: 3, kind: input, shape index: {}]
  %s4 = inlined_call_operand.vmem [shape: f32[1,384], index: 4, kind: input, shape index: {}]
  %s5 = inlined_call_operand.vmem [shape: f32[1,128], index: 5, kind: input, shape index: {}]
  %s6 = inlined_call_operand.vmem [shape: bf16[128,128], index: 6, kind: input, shape index: {}]
  %s7 = inlined_call_operand.vmem [shape: f32[1,128], index: 7, kind: input, shape index: {}]
  %s8 = inlined_call_operand.hbm [shape: f32[8,128], index: 8, kind: output, shape index: {}]
  %s9 = sld [smem:[#allocation0]]
  $region46: #{tpu_custom_call.1} parent=0
    _
  %s11 = ssub.s32 1, %s9
  %s12 = scalar_select 0, %s11, %s9
  $region1: #{tpu_custom_call.1} parent=0
    #allocation3 [shape = 'u8[98304]{0}', space=vmem, size = 0x18000, scoped, tag = 'input window, operand 3, single buffered']
    #allocation4 [shape = 's32[1]{0}', space=sflag, size = 0x4, scoped, tag = 'scoped memory for tpu_custom_call.1']
    #allocation5 [shape = 's32[1]{0}', space=sflag, size = 0x4, scoped, tag = 'scoped memory for tpu_custom_call.1']
    #allocation6 [shape = 'u8[4096]{0}', space=vmem, size = 0x1000, scoped, tag = 'output window, operand 0, single buffered']
    %13 = vsyncpa [#allocation4], 0
    %14 = vsyncpa [#allocation5], 0
    // Predicated region
    $region2: #{tpu_custom_call.1} parent=1 // pred_check
      _
    $region3: #{tpu_custom_call.1} parent=1 // pred_check_branch
      %16 = sbr.rel (0) target = $region5
    $region4: #{tpu_custom_call.1} parent=1 // pred_region
      _
    $region5: #{tpu_custom_call.1} parent=1 // pred_fallthru
      _
    // Predicated region
    $region6: #{tpu_custom_call.1} parent=1 // pred_check
      _
    $region7: #{tpu_custom_call.1} parent=1 // pred_check_branch
      %18 = sbr.rel (0) target = $region9
    $region8: #{tpu_custom_call.1} parent=1 // pred_region
      _
    $region9: #{tpu_custom_call.1} parent=1 // pred_fallthru
      _
    // Predicated region
    $region10: #{tpu_custom_call.1} parent=1 // pred_check
      _
    $region11: #{tpu_custom_call.1} parent=1 // pred_check_branch
      %20 = sbr.rel (0) target = $region13
    $region12: #{tpu_custom_call.1} parent=1 // pred_region
      _
    $region13: #{tpu_custom_call.1} parent=1 // pred_fallthru
      _
    // Predicated region
    $region14: #{tpu_custom_call.1} parent=1 // pred_check
      _
    $region15: #{tpu_custom_call.1} parent=1 // pred_check_branch
      %22 = sbr.rel (0) target = $region17
    $region16: #{tpu_custom_call.1} parent=1 // pred_region
      %s24 = ssub.s32 3072, 3072
      %25 = vsyncadd [#allocation4], %s24
      %s26 = sshll.u32 [#allocation3], 4
      %s27 = int_to_ptr.vmem [resolvable:$true] %s26
      %32 = dma.hbm_to_vmem [thread:$0]  %s3, 3072, %s27, [#allocation4], 192, 192, 12
    $region17: #{tpu_custom_call.1} parent=1 // pred_fallthru
      _
    // Predicated region
    $region18: #{tpu_custom_call.1} parent=1 // pred_check
      _
    $region19: #{tpu_custom_call.1} parent=1 // pred_check_branch
      %34 = sbr.rel (0) target = $region21
    $region20: #{tpu_custom_call.1} parent=1 // pred_region
      _
    $region21: #{tpu_custom_call.1} parent=1 // pred_fallthru
      _
    // Predicated region
    $region22: #{tpu_custom_call.1} parent=1 // pred_check
      _
    $region23: #{tpu_custom_call.1} parent=1 // pred_check_branch
      %36 = sbr.rel (0) target = $region25
    $region24: #{tpu_custom_call.1} parent=1 // pred_region
      _
    $region25: #{tpu_custom_call.1} parent=1 // pred_fallthru
      _
    // Predicated region
    $region26: #{tpu_custom_call.1} parent=1 // pred_check
      _
    $region27: #{tpu_custom_call.1} parent=1 // pred_check_branch
      %38 = sbr.rel (0) target = $region29
    $region28: #{tpu_custom_call.1} parent=1 // pred_region
      _
    $region29: #{tpu_custom_call.1} parent=1 // pred_fallthru
      _
    // Predicated region
    $region30: #{tpu_custom_call.1} parent=1 // pred_check
      _
    $region31: #{tpu_custom_call.1} parent=1 // pred_check_branch
      %40 = sbr.rel (0) target = $region33
    $region32: #{tpu_custom_call.1} parent=1 // pred_region
      _
    $region33: #{tpu_custom_call.1} parent=1 // pred_fallthru
      _
    // Predicated region
    $region34: #{tpu_custom_call.1} parent=1 // pred_check
      _
    $region35: #{tpu_custom_call.1} parent=1 // pred_check_branch
      %42 = sbr.rel (0) target = $region37
    $region36: #{tpu_custom_call.1} parent=1 // pred_region
      %43 = dma.done [#allocation4], 3072
    $region37: #{tpu_custom_call.1} parent=1 // pred_fallthru
      _
    %v45 = vld [vmem:[%s0] sm:$0xff]
    %v46 = vld [vmem:[%s0 + $0x8] sm:$0xff]
    %v47 = vld [vmem:[%s0 + $0x10] sm:$0xff]
    %v48 = vld [vmem:[%s0 + $0x18] sm:$0xff]
    %v49 = vld [vmem:[%s0 + $0x20] sm:$0xff]
    %v50 = vld [vmem:[%s0 + $0x28] sm:$0xff]
    %v51 = vld [vmem:[%s0 + $0x30] sm:$0xff]
    %v52 = vld [vmem:[%s0 + $0x38] sm:$0xff]
    %v53 = vlaneseq
    %v54 = vand.u32 %v53, 127
    %55 = vset.pattern.permute.xlu0 0
    %56 = vperm.xlu0 %55, %v45
    %v57 = vpop.permute.xlu0 %56
    %58 = vset.pattern.permute.xlu0 0
    %59 = vperm.xlu0 %58, %v46
    %v60 = vpop.permute.xlu0 %59
    %61 = vset.pattern.permute.xlu0 0
    %62 = vperm.xlu0 %61, %v47
    %v63 = vpop.permute.xlu0 %62
    %64 = vset.pattern.permute.xlu0 0
    %65 = vperm.xlu0 %64, %v48
    %v66 = vpop.permute.xlu0 %65
    %67 = vset.pattern.permute.xlu0 0
    %68 = vperm.xlu0 %67, %v49
    %v69 = vpop.permute.xlu0 %68
    %70 = vset.pattern.permute.xlu0 0
    %71 = vperm.xlu0 %70, %v50
    %v72 = vpop.permute.xlu0 %71
    %73 = vset.pattern.permute.xlu0 0
    %74 = vperm.xlu0 %73, %v51
    %v75 = vpop.permute.xlu0 %74
    %76 = vset.pattern.permute.xlu0 0
    %77 = vperm.xlu0 %76, %v52
    %v78 = vpop.permute.xlu0 %77
    %vm79 = vcmp.eq.s32.totalorder %v57, %v54
    %vm80 = vcmp.eq.s32.totalorder %v60, %v54
    %vm81 = vcmp.eq.s32.totalorder %v63, %v54
    %vm82 = vcmp.eq.s32.totalorder %v66, %v54
    %vm83 = vcmp.eq.s32.totalorder %v69, %v54
    %vm84 = vcmp.eq.s32.totalorder %v72, %v54
    %vm85 = vcmp.eq.s32.totalorder %v75, %v54
    %vm86 = vcmp.eq.s32.totalorder %v78, %v54
    %v87 = vsel %vm79, 1, 0
    %v88 = vsel %vm80, 1, 0
    %v89 = vsel %vm81, 1, 0
    %v90 = vsel %vm82, 1, 0
    %v91 = vsel %vm83, 1, 0
    %v92 = vsel %vm84, 1, 0
    %v93 = vsel %vm85, 1, 0
    %v94 = vsel %vm86, 1, 0
    %v95 = vcvt.s32.f32 %v87
    %v96 = vcvt.s32.f32 %v88
    %v97 = vcvt.s32.f32 %v89
    %v98 = vcvt.s32.f32 %v90
    %v99 = vcvt.s32.f32 %v91
    %v100 = vcvt.s32.f32 %v92
    %v101 = vcvt.s32.f32 %v93
    %v102 = vcvt.s32.f32 %v94
    %v103 = vpack.c.bf16 %v96, %v95
    %v104 = vpack.c.bf16 %v98, %v97
    %v105 = vpack.c.bf16 %v100, %v99
    %v106 = vpack.c.bf16 %v102, %v101
    %v107 = vld [vmem:[%s1] sm:$0xf]
    %v108 = vld [vmem:[%s1 + $0x4] sm:$0xf]
    %v109 = vld [vmem:[%s1 + $0x8] sm:$0xf]
    %v113 = vunpack.c.l.b16 %v107
    %v114 = vunpack.c.l.b16 %v108
    %v115 = vunpack.c.l.b16 %v109
    %v116 = vpack.c.b16 %v114, %v113
    %v117 = vpack.c.b16 %v115, %v115
    %vm119 = vcmask 195584
    %v121 = vsel %vm119, %v103, 0
    %v124 = vsel %vm119, %v104, 0
    %v127 = vsel %vm119, %v105, 0
    %v130 = vsel %vm119, %v106, 0
    %vm132 = vcmask 1043456
    %v134 = vsel %vm132, %v117, 0
    %136 = vmatprep.subr.bf16.mxu0 0
    %137 = vmatpush1.bf16.msra.mxu0 0
    %138 = vmatprep.subr.bf16.mxu0 0
    %139 = vmatpush1.bf16.msra.mxu0 0
    %140 = vmatprep.subr.bf16.mxu0 0
    %141 = vmatpush1.bf16.msra.mxu0 0
    %142 = vmatprep.subr.bf16.mxu0 0
    %143 = vmatpush1.bf16.msra.mxu0 0
    %144 = vmatprep.subr.bf16.mxu0 0
    %145 = vmatpush1.bf16.msra.mxu0 0
    %146 = vmatprep.subr.bf16.mxu0 0
    %147 = vmatpush1.bf16.msra.mxu0 0
    %148 = vmatprep.subr.bf16.mxu0 0
    %149 = vmatpush1.bf16.msra.mxu0 %v134
    %150 = vmatprep.subr.bf16.mxu0 0
    %151 = vmatpush1.bf16.msra.mxu0 %v116
    %152 = vmatprep.subr.bf16.mxu0 0
    %153 = vmatpush2.bf16.msra.mxu0 0
    %154 = vmatprep.subr.bf16.mxu0 0
    %155 = vmatpush2.bf16.msra.mxu0 0
    %156 = vmatprep.subr.bf16.mxu0 0
    %157 = vmatpush2.bf16.msra.mxu0 0
    %158 = vmatprep.subr.bf16.mxu0 0
    %159 = vmatpush2.bf16.msra.mxu0 0
    %160 = vmatprep.subr.bf16.mxu0 0
    %161 = vmatpush2.bf16.msra.mxu0 0
    %162 = vmatprep.subr.bf16.mxu0 0
    %163 = vmatpush2.bf16.msra.mxu0 0
    %164 = vmatprep.subr.bf16.mxu0 0
    %165 = vmatpush2.bf16.msra.mxu0 0
    %166 = vmatprep.subr.bf16.mxu0 0
    %167 = vmatpush2.bf16.msra.mxu0 0
    %168 = vmatprep.mubr.bf16.mxu0 0
    %169 = vmatmul.mubr.bf16.gmra.mxu0 %v121
    %v170 = vpop.f32.mrf.mxu0
    %v171 = vadd.f32 0.0, %v170
    %v172 = vpop.f32.mrf.mxu0
    %v173 = vpop.f32.mrf.mxu0
    %v174 = vadd.f32 0.0, %v173
    %v175 = vpop.f32.mrf.mxu0
    %176 = vmatprep.mubr.bf16.mxu0 0
    %177 = vmatmul.mubr.bf16.gmra.mxu0 %v124
    %v178 = vpop.f32.mrf.mxu0
    %v179 = vadd.f32 0.0, %v178
    %v180 = vpop.f32.mrf.mxu0
    %v181 = vpop.f32.mrf.mxu0
    %v182 = vadd.f32 0.0, %v181
    %v183 = vpop.f32.mrf.mxu0
    %184 = vmatprep.mubr.bf16.mxu0 0
    %185 = vmatmul.mubr.bf16.gmra.mxu0 %v127
    %v186 = vpop.f32.mrf.mxu0
    %v187 = vadd.f32 0.0, %v186
    %v188 = vpop.f32.mrf.mxu0
    %v189 = vpop.f32.mrf.mxu0
    %v190 = vadd.f32 0.0, %v189
    %v191 = vpop.f32.mrf.mxu0
    %192 = vmatprep.mubr.bf16.mxu0 0
    %193 = vmatmul.mubr.bf16.gmra.mxu0 %v130
    %v194 = vpop.f32.mrf.mxu0
    %v195 = vadd.f32 0.0, %v194
    %v196 = vpop.f32.mrf.mxu0
    %v197 = vpop.f32.mrf.mxu0
    %v198 = vadd.f32 0.0, %v197
    %v199 = vpop.f32.mrf.mxu0
    %200 = vdwg.mxu0
    %v201 = vpack.c.bf16 %v174, %v171
    %v202 = vpack.c.bf16 %v182, %v179
    %v203 = vpack.c.bf16 %v190, %v187
    %v204 = vpack.c.bf16 %v198, %v195
    %v205 = vld [vmem:[%s2] sm:$0xff]
    %v206 = vld [vmem:[%s2 + $0x8] sm:$0xf]
    %v207 = vld [vmem:[%s2 + $0xc] sm:$0xff]
    %v208 = vld [vmem:[%s2 + $0x14] sm:$0xf]
    %v209 = vld [vmem:[%s4] sm:$0x7]
    %v211 = vlaneseq
    %v212 = vshrl.u32 %v211, 7
    %v213 = vsub.s32 0, %v212
    %v214 = vrot.slane %v209, %v213
    %v215 = vlaneseq
    %v216 = vshrl.u32 %v215, 7
    %v217 = vsub.s32 1, %v216
    %v218 = vrot.slane %v209, %v217
    %v219 = vlaneseq
    %v220 = vshrl.u32 %v219, 7
    %v221 = vsub.s32 2, %v220
    %v222 = vrot.slane %v209, %v221
    %v230 = vunpack.c.l.b16 %v205
    %v231 = vunpack.c.h.b16 %v205
    %v232 = vunpack.c.l.b16 %v206
    %v233 = vunpack.c.l.b16 %v207
    %v234 = vunpack.c.h.b16 %v207
    %v235 = vunpack.c.l.b16 %v208
    %v236 = vpack.c.b16 %v233, %v230
    %v237 = vpack.c.b16 %v234, %v231
    %v238 = vpack.c.b16 %v235, %v232
    %vm242 = vcmask 130048
    %v244 = vsel %vm242, %v201, 0
    %v247 = vsel %vm242, %v202, 0
    %v250 = vsel %vm242, %v203, 0
    %v253 = vsel %vm242, %v204, 0
    %255 = vmatprep.subr.bf16.mxu0 0
    %256 = vmatpush1.bf16.msra.mxu0 0
    %257 = vmatprep.subr.bf16.mxu0 0
    %258 = vmatpush1.bf16.msra.mxu0 0
    %259 = vmatprep.subr.bf16.mxu0 0
    %260 = vmatpush1.bf16.msra.mxu0 0
    %261 = vmatprep.subr.bf16.mxu0 0
    %262 = vmatpush1.bf16.msra.mxu0 0
    %263 = vmatprep.subr.bf16.mxu0 0
    %264 = vmatpush1.bf16.msra.mxu0 0
    %265 = vmatprep.subr.bf16.mxu0 0
    %266 = vmatpush1.bf16.msra.mxu0 0
    %267 = vmatprep.subr.bf16.mxu0 0
    %268 = vmatpush1.bf16.msra.mxu0 0
    %269 = vmatprep.subr.bf16.mxu0 %v237
    %270 = vmatpush1.bf16.msra.mxu0 %v236
    %271 = vmatprep.subr.bf16.mxu0 0
    %272 = vmatpush2.bf16.msra.mxu0 0
    %273 = vmatprep.subr.bf16.mxu0 0
    %274 = vmatpush2.bf16.msra.mxu0 0
    %275 = vmatprep.subr.bf16.mxu0 0
    %276 = vmatpush2.bf16.msra.mxu0 0
    %277 = vmatprep.subr.bf16.mxu0 0
    %278 = vmatpush2.bf16.msra.mxu0 0
    %279 = vmatprep.subr.bf16.mxu0 0
    %280 = vmatpush2.bf16.msra.mxu0 0
    %281 = vmatprep.subr.bf16.mxu0 0
    %282 = vmatpush2.bf16.msra.mxu0 0
    %283 = vmatprep.subr.bf16.mxu0 0
    %284 = vmatpush2.bf16.msra.mxu0 0
    %285 = vmatprep.subr.bf16.mxu0 0
    %286 = vmatpush2.bf16.msra.mxu0 0
    %287 = vmatprep.mubr.bf16.mxu0 0
    %288 = vmatmul.mubr.bf16.gmra.mxu0 %v244
    %v289 = vpop.f32.mrf.mxu0
    %v290 = vadd.f32 %v214, %v289
    %v291 = vpop.f32.mrf.mxu0
    %v292 = vadd.f32 %v218, %v291
    %v293 = vpop.f32.mrf.mxu0
    %v294 = vadd.f32 %v214, %v293
    %v295 = vpop.f32.mrf.mxu0
    %v296 = vadd.f32 %v218, %v295
    %297 = vmatprep.mubr.bf16.mxu0 0
    %298 = vmatmul.mubr.bf16.gmra.mxu0 %v247
    %v299 = vpop.f32.mrf.mxu0
    %v300 = vadd.f32 %v214, %v299
    %v301 = vpop.f32.mrf.mxu0
    %v302 = vadd.f32 %v218, %v301
    %v303 = vpop.f32.mrf.mxu0
    %v304 = vadd.f32 %v214, %v303
    %v305 = vpop.f32.mrf.mxu0
    %v306 = vadd.f32 %v218, %v305
    %307 = vmatprep.mubr.bf16.mxu0 0
    %308 = vmatmul.mubr.bf16.gmra.mxu0 %v250
    %v309 = vpop.f32.mrf.mxu0
    %v310 = vadd.f32 %v214, %v309
    %v311 = vpop.f32.mrf.mxu0
    %v312 = vadd.f32 %v218, %v311
    %v313 = vpop.f32.mrf.mxu0
    %v314 = vadd.f32 %v214, %v313
    %v315 = vpop.f32.mrf.mxu0
    %v316 = vadd.f32 %v218, %v315
    %317 = vmatprep.mubr.bf16.mxu0 0
    %318 = vmatmul.mubr.bf16.gmra.mxu0 %v253
    %v319 = vpop.f32.mrf.mxu0
    %v320 = vadd.f32 %v214, %v319
    %v321 = vpop.f32.mrf.mxu0
    %v322 = vadd.f32 %v218, %v321
    %v323 = vpop.f32.mrf.mxu0
    %v324 = vadd.f32 %v214, %v323
    %v325 = vpop.f32.mrf.mxu0
    %v326 = vadd.f32 %v218, %v325
    %327 = vdwg.mxu0
    %328 = vmatprep.subr.bf16.mxu0 0
    %329 = vmatpush1.bf16.msra.mxu0 0
    %330 = vmatprep.subr.bf16.mxu0 0
    %331 = vmatpush1.bf16.msra.mxu0 0
    %332 = vmatprep.subr.bf16.mxu0 0
    %333 = vmatpush1.bf16.msra.mxu0 0
    %334 = vmatprep.subr.bf16.mxu0 0
    %335 = vmatpush1.bf16.msra.mxu0 0
    %336 = vmatprep.subr.bf16.mxu0 0
    %337 = vmatpush1.bf16.msra.mxu0 0
    %338 = vmatprep.subr.bf16.mxu0 0
    %339 = vmatpush1.bf16.msra.mxu0 0
    %340 = vmatprep.subr.bf16.mxu0 0
    %341 = vmatpush1.bf16.msra.mxu0 0
    %342 = vmatprep.subr.bf16.mxu0 0
    %343 = vmatpush1.bf16.msra.mxu0 %v238
    %344 = vmatprep.subr.bf16.mxu0 0
    %345 = vmatpush2.bf16.msra.mxu0 0
    %346 = vmatprep.subr.bf16.mxu0 0
    %347 = vmatpush2.bf16.msra.mxu0 0
    %348 = vmatprep.subr.bf16.mxu0 0
    %349 = vmatpush2.bf16.msra.mxu0 0
    %350 = vmatprep.subr.bf16.mxu0 0
    %351 = vmatpush2.bf16.msra.mxu0 0
    %352 = vmatprep.subr.bf16.mxu0 0
    %353 = vmatpush2.bf16.msra.mxu0 0
    %354 = vmatprep.subr.bf16.mxu0 0
    %355 = vmatpush2.bf16.msra.mxu0 0
    %356 = vmatprep.subr.bf16.mxu0 0
    %357 = vmatpush2.bf16.msra.mxu0 0
    %358 = vmatprep.subr.bf16.mxu0 0
    %359 = vmatpush2.bf16.msra.mxu0 0
    %360 = vmatprep.mubr.bf16.mxu0 0
    %361 = vmatmul.mubr.bf16.gmra.mxu0 %v244
    %v362 = vpop.f32.mrf.mxu0
    %v363 = vadd.f32 %v222, %v362
    %v364 = vpop.f32.mrf.mxu0
    %v365 = vpop.f32.mrf.mxu0
    %v366 = vadd.f32 %v222, %v365
    %v367 = vpop.f32.mrf.mxu0
    %368 = vmatprep.mubr.bf16.mxu0 0
    %369 = vmatmul.mubr.bf16.gmra.mxu0 %v247
    %v370 = vpop.f32.mrf.mxu0
    %v371 = vadd.f32 %v222, %v370
    %v372 = vpop.f32.mrf.mxu0
    %v373 = vpop.f32.mrf.mxu0
    %v374 = vadd.f32 %v222, %v373
    %v375 = vpop.f32.mrf.mxu0
    %376 = vmatprep.mubr.bf16.mxu0 0
    %377 = vmatmul.mubr.bf16.gmra.mxu0 %v250
    %v378 = vpop.f32.mrf.mxu0
    %v379 = vadd.f32 %v222, %v378
    %v380 = vpop.f32.mrf.mxu0
    %v381 = vpop.f32.mrf.mxu0
    %v382 = vadd.f32 %v222, %v381
    %v383 = vpop.f32.mrf.mxu0
    %384 = vmatprep.mubr.bf16.mxu0 0
    %385 = vmatmul.mubr.bf16.gmra.mxu0 %v253
    %v386 = vpop.f32.mrf.mxu0
    %v387 = vadd.f32 %v222, %v386
    %v388 = vpop.f32.mrf.mxu0
    %v389 = vpop.f32.mrf.mxu0
    %v390 = vadd.f32 %v222, %v389
    %v391 = vpop.f32.mrf.mxu0
    %392 = vdwg.mxu0
    %393 = vst [vmem:[#allocation2] sm:$0xff] %v290
    %394 = vst [vmem:[#allocation2 + $0x8] sm:$0xff] %v292
    %395 = vst [vmem:[#allocation2 + $0x10] sm:$0xff] %v363
    %396 = vst [vmem:[#allocation2 + $0x18] sm:$0xff] %v294
    %397 = vst [vmem:[#allocation2 + $0x20] sm:$0xff] %v296
    %398 = vst [vmem:[#allocation2 + $0x28] sm:$0xff] %v366
    %399 = vst [vmem:[#allocation2 + $0x30] sm:$0xff] %v300
    %400 = vst [vmem:[#allocation2 + $0x38] sm:$0xff] %v302
    %401 = vst [vmem:[#allocation2 + $0x40] sm:$0xff] %v371
    %402 = vst [vmem:[#allocation2 + $0x48] sm:$0xff] %v304
    %403 = vst [vmem:[#allocation2 + $0x50] sm:$0xff] %v306
    %404 = vst [vmem:[#allocation2 + $0x58] sm:$0xff] %v374
    %405 = vst [vmem:[#allocation2 + $0x60] sm:$0xff] %v310
    %406 = vst [vmem:[#allocation2 + $0x68] sm:$0xff] %v312
    %407 = vst [vmem:[#allocation2 + $0x70] sm:$0xff] %v379
    %408 = vst [vmem:[#allocation2 + $0x78] sm:$0xff] %v314
    %409 = vst [vmem:[#allocation2 + $0x80] sm:$0xff] %v316
    %410 = vst [vmem:[#allocation2 + $0x88] sm:$0xff] %v382
    %411 = vst [vmem:[#allocation2 + $0x90] sm:$0xff] %v320
    %412 = vst [vmem:[#allocation2 + $0x98] sm:$0xff] %v322
    %413 = vst [vmem:[#allocation2 + $0xa0] sm:$0xff] %v387
    %414 = vst [vmem:[#allocation2 + $0xa8] sm:$0xff] %v324
    %415 = vst [vmem:[#allocation2 + $0xb0] sm:$0xff] %v326
    %416 = vst [vmem:[#allocation2 + $0xb8] sm:$0xff] %v390
    %v417 = vld [vmem:[#allocation3] sm:$0xff]
    %v418 = vld [vmem:[#allocation3 + $0x8] sm:$0xf]
    %v419 = vld [vmem:[#allocation3 + $0xc] sm:$0xff]
    %v420 = vld [vmem:[#allocation3 + $0x14] sm:$0xf]
    %v421 = vld [vmem:[#allocation3 + $0x18] sm:$0xff]
    %v422 = vld [vmem:[#allocation3 + $0x20] sm:$0xf]
    %v423 = vld [vmem:[#allocation3 + $0x24] sm:$0xff]
    %v424 = vld [vmem:[#allocation3 + $0x2c] sm:$0xf]
    %v425 = vld [vmem:[#allocation3 + $0x30] sm:$0xff]
    %v426 = vld [vmem:[#allocation3 + $0x38] sm:$0xf]
    %v427 = vld [vmem:[#allocation3 + $0x3c] sm:$0xff]
    %v428 = vld [vmem:[#allocation3 + $0x44] sm:$0xf]
    %v429 = vld [vmem:[#allocation3 + $0x48] sm:$0xff]
    %v430 = vld [vmem:[#allocation3 + $0x50] sm:$0xf]
    %v431 = vld [vmem:[#allocation3 + $0x54] sm:$0xff]
    %v432 = vld [vmem:[#allocation3 + $0x5c] sm:$0xf]
    %v433 = vld [vmem:[#allocation3 + $0x60] sm:$0xff]
    %v434 = vld [vmem:[#allocation3 + $0x68] sm:$0xf]
    %v435 = vld [vmem:[#allocation3 + $0x6c] sm:$0xff]
    %v436 = vld [vmem:[#allocation3 + $0x74] sm:$0xf]
    %v437 = vld [vmem:[#allocation3 + $0x78] sm:$0xff]
    %v438 = vld [vmem:[#allocation3 + $0x80] sm:$0xf]
    %v439 = vld [vmem:[#allocation3 + $0x84] sm:$0xff]
    %v440 = vld [vmem:[#allocation3 + $0x8c] sm:$0xf]
    %v441 = vld [vmem:[#allocation3 + $0x90] sm:$0xff]
    %v442 = vld [vmem:[#allocation3 + $0x98] sm:$0xf]
    %v443 = vld [vmem:[#allocation3 + $0x9c] sm:$0xff]
    %v444 = vld [vmem:[#allocation3 + $0xa4] sm:$0xf]
    %v445 = vld [vmem:[#allocation3 + $0xa8] sm:$0xff]
    %v446 = vld [vmem:[#allocation3 + $0xb0] sm:$0xf]
    %v447 = vld [vmem:[#allocation3 + $0xb4] sm:$0xff]
    %v448 = vld [vmem:[#allocation3 + $0xbc] sm:$0xf]
    %v449 = vld [vmem:[%s5] sm:$0x1]
    %s450 = smul.u32 0, 3
    %s451 = smul.addr %s450, 8
    %s452 = scalar_lea.vmem [#allocation2], %s451
    %v453 = vld [vmem:[%s452] sm:$0xff]
    %v454 = vld [vmem:[%s452 + $0x8] sm:$0xff]
    %v455 = vld [vmem:[%s452 + $0x10] sm:$0xff]
    %v488 = vunpack.c.l.b16 %v417
    %v489 = vunpack.c.h.b16 %v417
    %v490 = vunpack.c.l.b16 %v418
    %v491 = vunpack.c.l.b16 %v419
    %v492 = vunpack.c.h.b16 %v419
    %v493 = vunpack.c.l.b16 %v420
    %v494 = vunpack.c.l.b16 %v421
    %v495 = vunpack.c.h.b16 %v421
    %v496 = vunpack.c.l.b16 %v422
    %v497 = vunpack.c.l.b16 %v423
    %v498 = vunpack.c.h.b16 %v423
    %v499 = vunpack.c.l.b16 %v424
    %v500 = vunpack.c.l.b16 %v425
    %v501 = vunpack.c.h.b16 %v425
    %v502 = vunpack.c.l.b16 %v426
    %v503 = vunpack.c.l.b16 %v427
    %v504 = vunpack.c.h.b16 %v427
    %v505 = vunpack.c.l.b16 %v428
    %v506 = vunpack.c.l.b16 %v429
    %v507 = vunpack.c.h.b16 %v429
    %v508 = vunpack.c.l.b16 %v430
    %v509 = vunpack.c.l.b16 %v431
    %v510 = vunpack.c.h.b16 %v431
    %v511 = vunpack.c.l.b16 %v432
    %v512 = vunpack.c.l.b16 %v433
    %v513 = vunpack.c.h.b16 %v433
    %v514 = vunpack.c.l.b16 %v434
    %v515 = vunpack.c.l.b16 %v435
    %v516 = vunpack.c.h.b16 %v435
    %v517 = vunpack.c.l.b16 %v436
    %v518 = vunpack.c.l.b16 %v437
    %v519 = vunpack.c.h.b16 %v437
    %v520 = vunpack.c.l.b16 %v438
    %v521 = vunpack.c.l.b16 %v439
    %v522 = vunpack.c.h.b16 %v439
    %v523 = vunpack.c.l.b16 %v440
    %v524 = vunpack.c.l.b16 %v441
    %v525 = vunpack.c.h.b16 %v441
    %v526 = vunpack.c.l.b16 %v442
    %v527 = vunpack.c.l.b16 %v443
    %v528 = vunpack.c.h.b16 %v443
    %v529 = vunpack.c.l.b16 %v444
    %v530 = vunpack.c.l.b16 %v445
    %v531 = vunpack.c.h.b16 %v445
    %v532 = vunpack.c.l.b16 %v446
    %v533 = vunpack.c.l.b16 %v447
    %v534 = vunpack.c.h.b16 %v447
    %v535 = vunpack.c.l.b16 %v448
    %v536 = vpack.c.b16 %v491, %v488
    %v537 = vpack.c.b16 %v492, %v489
    %v538 = vpack.c.b16 %v493, %v490
    %v539 = vpack.c.b16 %v497, %v494
    %v540 = vpack.c.b16 %v498, %v495
    %v541 = vpack.c.b16 %v499, %v496
    %v542 = vpack.c.b16 %v503, %v500
    %v543 = vpack.c.b16 %v504, %v501
    %v544 = vpack.c.b16 %v505, %v502
    %v545 = vpack.c.b16 %v509, %v506
    %v546 = vpack.c.b16 %v510, %v507
    %v547 = vpack.c.b16 %v511, %v508
    %v548 = vpack.c.b16 %v515, %v512
    %v549 = vpack.c.b16 %v516, %v513
    %v550 = vpack.c.b16 %v517, %v514
    %v551 = vpack.c.b16 %v521, %v518
    %v552 = vpack.c.b16 %v522, %v519
    %v553 = vpack.c.b16 %v523, %v520
    %v554 = vpack.c.b16 %v527, %v524
    %v555 = vpack.c.b16 %v528, %v525
    %v556 = vpack.c.b16 %v529, %v526
    %v557 = vpack.c.b16 %v533, %v530
    %v558 = vpack.c.b16 %v534, %v531
    %v559 = vpack.c.b16 %v535, %v532
    %584 = vmatprep.subr.bf16.mxu0 %v558
    %585 = vmatpush1.bf16.msra.mxu0 %v557
    %586 = vmatprep.subr.bf16.mxu0 %v555
    %587 = vmatpush1.bf16.msra.mxu0 %v554
    %588 = vmatprep.subr.bf16.mxu0 %v552
    %589 = vmatpush1.bf16.msra.mxu0 %v551
    %590 = vmatprep.subr.bf16.mxu0 %v549
    %591 = vmatpush1.bf16.msra.mxu0 %v548
    %592 = vmatprep.subr.bf16.mxu0 %v546
    %593 = vmatpush1.bf16.msra.mxu0 %v545
    %594 = vmatprep.subr.bf16.mxu0 %v543
    %595 = vmatpush1.bf16.msra.mxu0 %v542
    %596 = vmatprep.subr.bf16.mxu0 %v540
    %597 = vmatpush1.bf16.msra.mxu0 %v539
    %598 = vmatprep.subr.bf16.mxu0 %v537
    %599 = vmatpush1.bf16.msra.mxu0 %v536
    %600 = vmatprep.subr.bf16.mxu0 0
    %601 = vmatpush2.bf16.msra.mxu0 0
    %602 = vmatprep.subr.bf16.mxu0 0
    %603 = vmatpush2.bf16.msra.mxu0 0
    %604 = vmatprep.subr.bf16.mxu0 0
    %605 = vmatpush2.bf16.msra.mxu0 0
    %606 = vmatprep.subr.bf16.mxu0 0
    %607 = vmatpush2.bf16.msra.mxu0 0
    %608 = vmatprep.subr.bf16.mxu0 0
    %609 = vmatpush2.bf16.msra.mxu0 0
    %610 = vmatprep.subr.bf16.mxu0 0
    %611 = vmatpush2.bf16.msra.mxu0 0
    %612 = vmatprep.subr.bf16.mxu0 0
    %613 = vmatpush2.bf16.msra.mxu0 0
    %614 = vmatprep.subr.bf16.mxu0 0
    %615 = vmatpush2.bf16.msra.mxu0 0
    %616 = vmatprep.mubr.bf16.mxu0 0
    %617 = vmatmul.mubr.bf16.gmra.mxu0 0
    %v618 = vpop.f32.mrf.mxu0
    %v619 = vadd.f32 0.0, %v618
    %v620 = vpop.f32.mrf.mxu0
    %v621 = vadd.f32 0.0, %v620
    %v622 = vpop.f32.mrf.mxu0
    %v623 = vpop.f32.mrf.mxu0
    %624 = vdwg.mxu0
    %625 = vmatprep.subr.bf16.mxu0 0
    %626 = vmatpush1.bf16.msra.mxu0 %v559
    %627 = vmatprep.subr.bf16.mxu0 0
    %628 = vmatpush1.bf16.msra.mxu0 %v556
    %629 = vmatprep.subr.bf16.mxu0 0
    %630 = vmatpush1.bf16.msra.mxu0 %v553
    %631 = vmatprep.subr.bf16.mxu0 0
    %632 = vmatpush1.bf16.msra.mxu0 %v550
    %633 = vmatprep.subr.bf16.mxu0 0
    %634 = vmatpush1.bf16.msra.mxu0 %v547
    %635 = vmatprep.subr.bf16.mxu0 0
    %636 = vmatpush1.bf16.msra.mxu0 %v544
    %637 = vmatprep.subr.bf16.mxu0 0
    %638 = vmatpush1.bf16.msra.mxu0 %v541
    %639 = vmatprep.subr.bf16.mxu0 0
    %640 = vmatpush1.bf16.msra.mxu0 %v538
    %641 = vmatprep.subr.bf16.mxu0 0
    %642 = vmatpush2.bf16.msra.mxu0 0
    %643 = vmatprep.subr.bf16.mxu0 0
    %644 = vmatpush2.bf16.msra.mxu0 0
    %645 = vmatprep.subr.bf16.mxu0 0
    %646 = vmatpush2.bf16.msra.mxu0 0
    %647 = vmatprep.subr.bf16.mxu0 0
    %648 = vmatpush2.bf16.msra.mxu0 0
    %649 = vmatprep.subr.bf16.mxu0 0
    %650 = vmatpush2.bf16.msra.mxu0 0
    %651 = vmatprep.subr.bf16.mxu0 0
    %652 = vmatpush2.bf16.msra.mxu0 0
    %653 = vmatprep.subr.bf16.mxu0 0
    %654 = vmatpush2.bf16.msra.mxu0 0
    %655 = vmatprep.subr.bf16.mxu0 0
    %656 = vmatpush2.bf16.msra.mxu0 0
    %657 = vmatprep.mubr.bf16.mxu0 0
    %658 = vmatmul.mubr.bf16.gmra.mxu0 0
    %v659 = vpop.f32.mrf.mxu0
    %v660 = vadd.f32 0.0, %v659
    %v661 = vpop.f32.mrf.mxu0
    %v662 = vpop.f32.mrf.mxu0
    %v663 = vpop.f32.mrf.mxu0
    %664 = vdwg.mxu0
    %v665 = vadd.f32 %v453, %v619
    %v666 = vxor.u32 %v665, 2147483648
    %v667 = vmul.f32 %v666, 1.442695
    %v668 = vpow.pop %v667
    %v669 = vadd.f32 %v668, 1.0
    %v670 = vrcp.pop %v669
    %v671 = vmul.f32 1.0, %v670
    %v672 = vadd.f32 %v454, %v621
    %v673 = vxor.u32 %v672, 2147483648
    %v674 = vmul.f32 %v673, 1.442695
    %v675 = vpow.pop %v674
    %v676 = vadd.f32 %v675, 1.0
    %v677 = vrcp.pop %v676
    %v678 = vmul.f32 1.0, %v677
    %v680 = vlaneseq
    %v681 = vshrl.u32 %v680, 7
    %v682 = vsub.s32 0, %v681
    %v683 = vrot.slane %v449, %v682
    %v685 = vadd.f32 %v660, %v683
    %v686 = vmul.f32 %v671, %v685
    %v687 = vadd.f32 %v455, %v686
    %v688 = vtanh.pop %v687
    %v689 = vsub.f32 1.0, %v678
    %v690 = vmul.f32 %v689, %v688
    %v691 = vmul.f32 %v678, 0.0
    %v692 = vadd.f32 %v690, %v691
    %s693 = smul.u32 1, 3
    %s694 = smul.addr %s693, 8
    %s695 = scalar_lea.vmem [#allocation2], %s694
    %v696 = vld [vmem:[%s695] sm:$0xff]
    %v697 = vld [vmem:[%s695 + $0x8] sm:$0xff]
    %v698 = vld [vmem:[%s695 + $0x10] sm:$0xff]
    %v699 = vpack.c.bf16 %v692, %v692
    %700 = vmatprep.subr.bf16.mxu0 %v558
    %701 = vmatpush1.bf16.msra.mxu0 %v557
    %702 = vmatprep.subr.bf16.mxu0 %v555
    %703 = vmatpush1.bf16.msra.mxu0 %v554
    %704 = vmatprep.subr.bf16.mxu0 %v552
    %705 = vmatpush1.bf16.msra.mxu0 %v551
    %706 = vmatprep.subr.bf16.mxu0 %v549
    %707 = vmatpush1.bf16.msra.mxu0 %v548
    %708 = vmatprep.subr.bf16.mxu0 %v546
    %709 = vmatpush1.bf16.msra.mxu0 %v545
    %710 = vmatprep.subr.bf16.mxu0 %v543
    %711 = vmatpush1.bf16.msra.mxu0 %v542
    %712 = vmatprep.subr.bf16.mxu0 %v540
    %713 = vmatpush1.bf16.msra.mxu0 %v539
    %714 = vmatprep.subr.bf16.mxu0 %v537
    %715 = vmatpush1.bf16.msra.mxu0 %v536
    %716 = vmatprep.subr.bf16.mxu0 0
    %717 = vmatpush2.bf16.msra.mxu0 0
    %718 = vmatprep.subr.bf16.mxu0 0
    %719 = vmatpush2.bf16.msra.mxu0 0
    %720 = vmatprep.subr.bf16.mxu0 0
    %721 = vmatpush2.bf16.msra.mxu0 0
    %722 = vmatprep.subr.bf16.mxu0 0
    %723 = vmatpush2.bf16.msra.mxu0 0
    %724 = vmatprep.subr.bf16.mxu0 0
    %725 = vmatpush2.bf16.msra.mxu0 0
    %726 = vmatprep.subr.bf16.mxu0 0
    %727 = vmatpush2.bf16.msra.mxu0 0
    %728 = vmatprep.subr.bf16.mxu0 0
    %729 = vmatpush2.bf16.msra.mxu0 0
    %730 = vmatprep.subr.bf16.mxu0 0
    %731 = vmatpush2.bf16.msra.mxu0 0
    %732 = vmatprep.mubr.bf16.mxu0 0
    %733 = vmatmul.mubr.bf16.gmra.mxu0 %v699
    %v734 = vpop.f32.mrf.mxu0
    %v735 = vadd.f32 0.0, %v734
    %v736 = vpop.f32.mrf.mxu0
    %v737 = vadd.f32 0.0, %v736
    %v738 = vpop.f32.mrf.mxu0
    %v739 = vpop.f32.mrf.mxu0
    %740 = vdwg.mxu0
    %741 = vmatprep.subr.bf16.mxu0 0
    %742 = vmatpush1.bf16.msra.mxu0 %v559
    %743 = vmatprep.subr.bf16.mxu0 0
    %744 = vmatpush1.bf16.msra.mxu0 %v556
    %745 = vmatprep.subr.bf16.mxu0 0
    %746 = vmatpush1.bf16.msra.mxu0 %v553
    %747 = vmatprep.subr.bf16.mxu0 0
    %748 = vmatpush1.bf16.msra.mxu0 %v550
    %749 = vmatprep.subr.bf16.mxu0 0
    %750 = vmatpush1.bf16.msra.mxu0 %v547
    %751 = vmatprep.subr.bf16.mxu0 0
    %752 = vmatpush1.bf16.msra.mxu0 %v544
    %753 = vmatprep.subr.bf16.mxu0 0
    %754 = vmatpush1.bf16.msra.mxu0 %v541
    %755 = vmatprep.subr.bf16.mxu0 0
    %756 = vmatpush1.bf16.msra.mxu0 %v538
    %757 = vmatprep.subr.bf16.mxu0 0
    %758 = vmatpush2.bf16.msra.mxu0 0
    %759 = vmatprep.subr.bf16.mxu0 0
    %760 = vmatpush2.bf16.msra.mxu0 0
    %761 = vmatprep.subr.bf16.mxu0 0
    %762 = vmatpush2.bf16.msra.mxu0 0
    %763 = vmatprep.subr.bf16.mxu0 0
    %764 = vmatpush2.bf16.msra.mxu0 0
    %765 = vmatprep.subr.bf16.mxu0 0
    %766 = vmatpush2.bf16.msra.mxu0 0
    %767 = vmatprep.subr.bf16.mxu0 0
    %768 = vmatpush2.bf16.msra.mxu0 0
    %769 = vmatprep.subr.bf16.mxu0 0
    %770 = vmatpush2.bf16.msra.mxu0 0
    %771 = vmatprep.subr.bf16.mxu0 0
    %772 = vmatpush2.bf16.msra.mxu0 0
    %773 = vmatprep.mubr.bf16.mxu0 0
    %774 = vmatmul.mubr.bf16.gmra.mxu0 %v699
    %v775 = vpop.f32.mrf.mxu0
    %v776 = vadd.f32 0.0, %v775
    %v777 = vpop.f32.mrf.mxu0
    %v778 = vpop.f32.mrf.mxu0
    %v779 = vpop.f32.mrf.mxu0
    %780 = vdwg.mxu0
    %v781 = vadd.f32 %v696, %v735
    %v782 = vxor.u32 %v781, 2147483648
    %v783 = vmul.f32 %v782, 1.442695
    %v784 = vpow.pop %v783
    %v785 = vadd.f32 %v784, 1.0
    %v786 = vrcp.pop %v785
    %v787 = vmul.f32 1.0, %v786
    %v788 = vadd.f32 %v697, %v737
    %v789 = vxor.u32 %v788, 2147483648
    %v790 = vmul.f32 %v789, 1.442695
    %v791 = vpow.pop %v790
    %v792 = vadd.f32 %v791, 1.0
    %v793 = vrcp.pop %v792
    %v794 = vmul.f32 1.0, %v793
    %v795 = vadd.f32 %v776, %v683
    %v796 = vmul.f32 %v787, %v795
    %v797 = vadd.f32 %v698, %v796
    %v798 = vtanh.pop %v797
    %v799 = vsub.f32 1.0, %v794
    %v800 = vmul.f32 %v799, %v798
    %v801 = vmul.f32 %v794, %v692
    %v802 = vadd.f32 %v800, %v801
    %s803 = smul.u32 2, 3
    %s804 = smul.addr %s803, 8
    %s805 = scalar_lea.vmem [#allocation2], %s804
    %v806 = vld [vmem:[%s805] sm:$0xff]
    %v807 = vld [vmem:[%s805 + $0x8] sm:$0xff]
    %v808 = vld [vmem:[%s805 + $0x10] sm:$0xff]
    %v809 = vpack.c.bf16 %v802, %v802
    %810 = vmatprep.subr.bf16.mxu0 %v558
    %811 = vmatpush1.bf16.msra.mxu0 %v557
    %812 = vmatprep.subr.bf16.mxu0 %v555
    %813 = vmatpush1.bf16.msra.mxu0 %v554
    %814 = vmatprep.subr.bf16.mxu0 %v552
    %815 = vmatpush1.bf16.msra.mxu0 %v551
    %816 = vmatprep.subr.bf16.mxu0 %v549
    %817 = vmatpush1.bf16.msra.mxu0 %v548
    %818 = vmatprep.subr.bf16.mxu0 %v546
    %819 = vmatpush1.bf16.msra.mxu0 %v545
    %820 = vmatprep.subr.bf16.mxu0 %v543
    %821 = vmatpush1.bf16.msra.mxu0 %v542
    %822 = vmatprep.subr.bf16.mxu0 %v540
    %823 = vmatpush1.bf16.msra.mxu0 %v539
    %824 = vmatprep.subr.bf16.mxu0 %v537
    %825 = vmatpush1.bf16.msra.mxu0 %v536
    %826 = vmatprep.subr.bf16.mxu0 0
    %827 = vmatpush2.bf16.msra.mxu0 0
    %828 = vmatprep.subr.bf16.mxu0 0
    %829 = vmatpush2.bf16.msra.mxu0 0
    %830 = vmatprep.subr.bf16.mxu0 0
    %831 = vmatpush2.bf16.msra.mxu0 0
    %832 = vmatprep.subr.bf16.mxu0 0
    %833 = vmatpush2.bf16.msra.mxu0 0
    %834 = vmatprep.subr.bf16.mxu0 0
    %835 = vmatpush2.bf16.msra.mxu0 0
    %836 = vmatprep.subr.bf16.mxu0 0
    %837 = vmatpush2.bf16.msra.mxu0 0
    %838 = vmatprep.subr.bf16.mxu0 0
    %839 = vmatpush2.bf16.msra.mxu0 0
    %840 = vmatprep.subr.bf16.mxu0 0
    %841 = vmatpush2.bf16.msra.mxu0 0
    %842 = vmatprep.mubr.bf16.mxu0 0
    %843 = vmatmul.mubr.bf16.gmra.mxu0 %v809
    %v844 = vpop.f32.mrf.mxu0
    %v845 = vadd.f32 0.0, %v844
    %v846 = vpop.f32.mrf.mxu0
    %v847 = vadd.f32 0.0, %v846
    %v848 = vpop.f32.mrf.mxu0
    %v849 = vpop.f32.mrf.mxu0
    %850 = vdwg.mxu0
    %851 = vmatprep.subr.bf16.mxu0 0
    %852 = vmatpush1.bf16.msra.mxu0 %v559
    %853 = vmatprep.subr.bf16.mxu0 0
    %854 = vmatpush1.bf16.msra.mxu0 %v556
    %855 = vmatprep.subr.bf16.mxu0 0
    %856 = vmatpush1.bf16.msra.mxu0 %v553
    %857 = vmatprep.subr.bf16.mxu0 0
    %858 = vmatpush1.bf16.msra.mxu0 %v550
    %859 = vmatprep.subr.bf16.mxu0 0
    %860 = vmatpush1.bf16.msra.mxu0 %v547
    %861 = vmatprep.subr.bf16.mxu0 0
    %862 = vmatpush1.bf16.msra.mxu0 %v544
    %863 = vmatprep.subr.bf16.mxu0 0
    %864 = vmatpush1.bf16.msra.mxu0 %v541
    %865 = vmatprep.subr.bf16.mxu0 0
    %866 = vmatpush1.bf16.msra.mxu0 %v538
    %867 = vmatprep.subr.bf16.mxu0 0
    %868 = vmatpush2.bf16.msra.mxu0 0
    %869 = vmatprep.subr.bf16.mxu0 0
    %870 = vmatpush2.bf16.msra.mxu0 0
    %871 = vmatprep.subr.bf16.mxu0 0
    %872 = vmatpush2.bf16.msra.mxu0 0
    %873 = vmatprep.subr.bf16.mxu0 0
    %874 = vmatpush2.bf16.msra.mxu0 0
    %875 = vmatprep.subr.bf16.mxu0 0
    %876 = vmatpush2.bf16.msra.mxu0 0
    %877 = vmatprep.subr.bf16.mxu0 0
    %878 = vmatpush2.bf16.msra.mxu0 0
    %879 = vmatprep.subr.bf16.mxu0 0
    %880 = vmatpush2.bf16.msra.mxu0 0
    %881 = vmatprep.subr.bf16.mxu0 0
    %882 = vmatpush2.bf16.msra.mxu0 0
    %883 = vmatprep.mubr.bf16.mxu0 0
    %884 = vmatmul.mubr.bf16.gmra.mxu0 %v809
    %v885 = vpop.f32.mrf.mxu0
    %v886 = vadd.f32 0.0, %v885
    %v887 = vpop.f32.mrf.mxu0
    %v888 = vpop.f32.mrf.mxu0
    %v889 = vpop.f32.mrf.mxu0
    %890 = vdwg.mxu0
    %v891 = vadd.f32 %v806, %v845
    %v892 = vxor.u32 %v891, 2147483648
    %v893 = vmul.f32 %v892, 1.442695
    %v894 = vpow.pop %v893
    %v895 = vadd.f32 %v894, 1.0
    %v896 = vrcp.pop %v895
    %v897 = vmul.f32 1.0, %v896
    %v898 = vadd.f32 %v807, %v847
    %v899 = vxor.u32 %v898, 2147483648
    %v900 = vmul.f32 %v899, 1.442695
    %v901 = vpow.pop %v900
    %v902 = vadd.f32 %v901, 1.0
    %v903 = vrcp.pop %v902
    %v904 = vmul.f32 1.0, %v903
    %v905 = vadd.f32 %v886, %v683
    %v906 = vmul.f32 %v897, %v905
    %v907 = vadd.f32 %v808, %v906
    %v908 = vtanh.pop %v907
    %v909 = vsub.f32 1.0, %v904
    %v910 = vmul.f32 %v909, %v908
    %v911 = vmul.f32 %v904, %v802
    %v912 = vadd.f32 %v910, %v911
    %s913 = smul.u32 3, 3
    %s914 = smul.addr %s913, 8
    %s915 = scalar_lea.vmem [#allocation2], %s914
    %v916 = vld [vmem:[%s915] sm:$0xff]
    %v917 = vld [vmem:[%s915 + $0x8] sm:$0xff]
    %v918 = vld [vmem:[%s915 + $0x10] sm:$0xff]
    %v919 = vpack.c.bf16 %v912, %v912
    %920 = vmatprep.subr.bf16.mxu0 %v558
    %921 = vmatpush1.bf16.msra.mxu0 %v557
    %922 = vmatprep.subr.bf16.mxu0 %v555
    %923 = vmatpush1.bf16.msra.mxu0 %v554
    %924 = vmatprep.subr.bf16.mxu0 %v552
    %925 = vmatpush1.bf16.msra.mxu0 %v551
    %926 = vmatprep.subr.bf16.mxu0 %v549
    %927 = vmatpush1.bf16.msra.mxu0 %v548
    %928 = vmatprep.subr.bf16.mxu0 %v546
    %929 = vmatpush1.bf16.msra.mxu0 %v545
    %930 = vmatprep.subr.bf16.mxu0 %v543
    %931 = vmatpush1.bf16.msra.mxu0 %v542
    %932 = vmatprep.subr.bf16.mxu0 %v540
    %933 = vmatpush1.bf16.msra.mxu0 %v539
    %934 = vmatprep.subr.bf16.mxu0 %v537
    %935 = vmatpush1.bf16.msra.mxu0 %v536
    %936 = vmatprep.subr.bf16.mxu0 0
    %937 = vmatpush2.bf16.msra.mxu0 0
    %938 = vmatprep.subr.bf16.mxu0 0
    %939 = vmatpush2.bf16.msra.mxu0 0
    %940 = vmatprep.subr.bf16.mxu0 0
    %941 = vmatpush2.bf16.msra.mxu0 0
    %942 = vmatprep.subr.bf16.mxu0 0
    %943 = vmatpush2.bf16.msra.mxu0 0
    %944 = vmatprep.subr.bf16.mxu0 0
    %945 = vmatpush2.bf16.msra.mxu0 0
    %946 = vmatprep.subr.bf16.mxu0 0
    %947 = vmatpush2.bf16.msra.mxu0 0
    %948 = vmatprep.subr.bf16.mxu0 0
    %949 = vmatpush2.bf16.msra.mxu0 0
    %950 = vmatprep.subr.bf16.mxu0 0
    %951 = vmatpush2.bf16.msra.mxu0 0
    %952 = vmatprep.mubr.bf16.mxu0 0
    %953 = vmatmul.mubr.bf16.gmra.mxu0 %v919
    %v954 = vpop.f32.mrf.mxu0
    %v955 = vadd.f32 0.0, %v954
    %v956 = vpop.f32.mrf.mxu0
    %v957 = vadd.f32 0.0, %v956
    %v958 = vpop.f32.mrf.mxu0
    %v959 = vpop.f32.mrf.mxu0
    %960 = vdwg.mxu0
    %961 = vmatprep.subr.bf16.mxu0 0
    %962 = vmatpush1.bf16.msra.mxu0 %v559
    %963 = vmatprep.subr.bf16.mxu0 0
    %964 = vmatpush1.bf16.msra.mxu0 %v556
    %965 = vmatprep.subr.bf16.mxu0 0
    %966 = vmatpush1.bf16.msra.mxu0 %v553
    %967 = vmatprep.subr.bf16.mxu0 0
    %968 = vmatpush1.bf16.msra.mxu0 %v550
    %969 = vmatprep.subr.bf16.mxu0 0
    %970 = vmatpush1.bf16.msra.mxu0 %v547
    %971 = vmatprep.subr.bf16.mxu0 0
    %972 = vmatpush1.bf16.msra.mxu0 %v544
    %973 = vmatprep.subr.bf16.mxu0 0
    %974 = vmatpush1.bf16.msra.mxu0 %v541
    %975 = vmatprep.subr.bf16.mxu0 0
    %976 = vmatpush1.bf16.msra.mxu0 %v538
    %977 = vmatprep.subr.bf16.mxu0 0
    %978 = vmatpush2.bf16.msra.mxu0 0
    %979 = vmatprep.subr.bf16.mxu0 0
    %980 = vmatpush2.bf16.msra.mxu0 0
    %981 = vmatprep.subr.bf16.mxu0 0
    %982 = vmatpush2.bf16.msra.mxu0 0
    %983 = vmatprep.subr.bf16.mxu0 0
    %984 = vmatpush2.bf16.msra.mxu0 0
    %985 = vmatprep.subr.bf16.mxu0 0
    %986 = vmatpush2.bf16.msra.mxu0 0
    %987 = vmatprep.subr.bf16.mxu0 0
    %988 = vmatpush2.bf16.msra.mxu0 0
    %989 = vmatprep.subr.bf16.mxu0 0
    %990 = vmatpush2.bf16.msra.mxu0 0
    %991 = vmatprep.subr.bf16.mxu0 0
    %992 = vmatpush2.bf16.msra.mxu0 0
    %993 = vmatprep.mubr.bf16.mxu0 0
    %994 = vmatmul.mubr.bf16.gmra.mxu0 %v919
    %v995 = vpop.f32.mrf.mxu0
    %v996 = vadd.f32 0.0, %v995
    %v997 = vpop.f32.mrf.mxu0
    %v998 = vpop.f32.mrf.mxu0
    %v999 = vpop.f32.mrf.mxu0
    %1000 = vdwg.mxu0
    %v1001 = vadd.f32 %v916, %v955
    %v1002 = vxor.u32 %v1001, 2147483648
    %v1003 = vmul.f32 %v1002, 1.442695
    %v1004 = vpow.pop %v1003
    %v1005 = vadd.f32 %v1004, 1.0
    %v1006 = vrcp.pop %v1005
    %v1007 = vmul.f32 1.0, %v1006
    %v1008 = vadd.f32 %v917, %v957
    %v1009 = vxor.u32 %v1008, 2147483648
    %v1010 = vmul.f32 %v1009, 1.442695
    %v1011 = vpow.pop %v1010
    %v1012 = vadd.f32 %v1011, 1.0
    %v1013 = vrcp.pop %v1012
    %v1014 = vmul.f32 1.0, %v1013
    %v1015 = vadd.f32 %v996, %v683
    %v1016 = vmul.f32 %v1007, %v1015
    %v1017 = vadd.f32 %v918, %v1016
    %v1018 = vtanh.pop %v1017
    %v1019 = vsub.f32 1.0, %v1014
    %v1020 = vmul.f32 %v1019, %v1018
    %v1021 = vmul.f32 %v1014, %v912
    %v1022 = vadd.f32 %v1020, %v1021
    %s1023 = smul.u32 4, 3
    %s1024 = smul.addr %s1023, 8
    %s1025 = scalar_lea.vmem [#allocation2], %s1024
    %v1026 = vld [vmem:[%s1025] sm:$0xff]
    %v1027 = vld [vmem:[%s1025 + $0x8] sm:$0xff]
    %v1028 = vld [vmem:[%s1025 + $0x10] sm:$0xff]
    %v1029 = vpack.c.bf16 %v1022, %v1022
    %1030 = vmatprep.subr.bf16.mxu0 %v558
    %1031 = vmatpush1.bf16.msra.mxu0 %v557
    %1032 = vmatprep.subr.bf16.mxu0 %v555
    %1033 = vmatpush1.bf16.msra.mxu0 %v554
    %1034 = vmatprep.subr.bf16.mxu0 %v552
    %1035 = vmatpush1.bf16.msra.mxu0 %v551
    %1036 = vmatprep.subr.bf16.mxu0 %v549
    %1037 = vmatpush1.bf16.msra.mxu0 %v548
    %1038 = vmatprep.subr.bf16.mxu0 %v546
    %1039 = vmatpush1.bf16.msra.mxu0 %v545
    %1040 = vmatprep.subr.bf16.mxu0 %v543
    %1041 = vmatpush1.bf16.msra.mxu0 %v542
    %1042 = vmatprep.subr.bf16.mxu0 %v540
    %1043 = vmatpush1.bf16.msra.mxu0 %v539
    %1044 = vmatprep.subr.bf16.mxu0 %v537
    %1045 = vmatpush1.bf16.msra.mxu0 %v536
    %1046 = vmatprep.subr.bf16.mxu0 0
    %1047 = vmatpush2.bf16.msra.mxu0 0
    %1048 = vmatprep.subr.bf16.mxu0 0
    %1049 = vmatpush2.bf16.msra.mxu0 0
    %1050 = vmatprep.subr.bf16.mxu0 0
    %1051 = vmatpush2.bf16.msra.mxu0 0
    %1052 = vmatprep.subr.bf16.mxu0 0
    %1053 = vmatpush2.bf16.msra.mxu0 0
    %1054 = vmatprep.subr.bf16.mxu0 0
    %1055 = vmatpush2.bf16.msra.mxu0 0
    %1056 = vmatprep.subr.bf16.mxu0 0
    %1057 = vmatpush2.bf16.msra.mxu0 0
    %1058 = vmatprep.subr.bf16.mxu0 0
    %1059 = vmatpush2.bf16.msra.mxu0 0
    %1060 = vmatprep.subr.bf16.mxu0 0
    %1061 = vmatpush2.bf16.msra.mxu0 0
    %1062 = vmatprep.mubr.bf16.mxu0 0
    %1063 = vmatmul.mubr.bf16.gmra.mxu0 %v1029
    %v1064 = vpop.f32.mrf.mxu0
    %v1065 = vadd.f32 0.0, %v1064
    %v1066 = vpop.f32.mrf.mxu0
    %v1067 = vadd.f32 0.0, %v1066
    %v1068 = vpop.f32.mrf.mxu0
    %v1069 = vpop.f32.mrf.mxu0
    %1070 = vdwg.mxu0
    %1071 = vmatprep.subr.bf16.mxu0 0
    %1072 = vmatpush1.bf16.msra.mxu0 %v559
    %1073 = vmatprep.subr.bf16.mxu0 0
    %1074 = vmatpush1.bf16.msra.mxu0 %v556
    %1075 = vmatprep.subr.bf16.mxu0 0
    %1076 = vmatpush1.bf16.msra.mxu0 %v553
    %1077 = vmatprep.subr.bf16.mxu0 0
    %1078 = vmatpush1.bf16.msra.mxu0 %v550
    %1079 = vmatprep.subr.bf16.mxu0 0
    %1080 = vmatpush1.bf16.msra.mxu0 %v547
    %1081 = vmatprep.subr.bf16.mxu0 0
    %1082 = vmatpush1.bf16.msra.mxu0 %v544
    %1083 = vmatprep.subr.bf16.mxu0 0
    %1084 = vmatpush1.bf16.msra.mxu0 %v541
    %1085 = vmatprep.subr.bf16.mxu0 0
    %1086 = vmatpush1.bf16.msra.mxu0 %v538
    %1087 = vmatprep.subr.bf16.mxu0 0
    %1088 = vmatpush2.bf16.msra.mxu0 0
    %1089 = vmatprep.subr.bf16.mxu0 0
    %1090 = vmatpush2.bf16.msra.mxu0 0
    %1091 = vmatprep.subr.bf16.mxu0 0
    %1092 = vmatpush2.bf16.msra.mxu0 0
    %1093 = vmatprep.subr.bf16.mxu0 0
    %1094 = vmatpush2.bf16.msra.mxu0 0
    %1095 = vmatprep.subr.bf16.mxu0 0
    %1096 = vmatpush2.bf16.msra.mxu0 0
    %1097 = vmatprep.subr.bf16.mxu0 0
    %1098 = vmatpush2.bf16.msra.mxu0 0
    %1099 = vmatprep.subr.bf16.mxu0 0
    %1100 = vmatpush2.bf16.msra.mxu0 0
    %1101 = vmatprep.subr.bf16.mxu0 0
    %1102 = vmatpush2.bf16.msra.mxu0 0
    %1103 = vmatprep.mubr.bf16.mxu0 0
    %1104 = vmatmul.mubr.bf16.gmra.mxu0 %v1029
    %v1105 = vpop.f32.mrf.mxu0
    %v1106 = vadd.f32 0.0, %v1105
    %v1107 = vpop.f32.mrf.mxu0
    %v1108 = vpop.f32.mrf.mxu0
    %v1109 = vpop.f32.mrf.mxu0
    %1110 = vdwg.mxu0
    %v1111 = vadd.f32 %v1026, %v1065
    %v1112 = vxor.u32 %v1111, 2147483648
    %v1113 = vmul.f32 %v1112, 1.442695
    %v1114 = vpow.pop %v1113
    %v1115 = vadd.f32 %v1114, 1.0
    %v1116 = vrcp.pop %v1115
    %v1117 = vmul.f32 1.0, %v1116
    %v1118 = vadd.f32 %v1027, %v1067
    %v1119 = vxor.u32 %v1118, 2147483648
    %v1120 = vmul.f32 %v1119, 1.442695
    %v1121 = vpow.pop %v1120
    %v1122 = vadd.f32 %v1121, 1.0
    %v1123 = vrcp.pop %v1122
    %v1124 = vmul.f32 1.0, %v1123
    %v1125 = vadd.f32 %v1106, %v683
    %v1126 = vmul.f32 %v1117, %v1125
    %v1127 = vadd.f32 %v1028, %v1126
    %v1128 = vtanh.pop %v1127
    %v1129 = vsub.f32 1.0, %v1124
    %v1130 = vmul.f32 %v1129, %v1128
    %v1131 = vmul.f32 %v1124, %v1022
    %v1132 = vadd.f32 %v1130, %v1131
    %s1133 = smul.u32 5, 3
    %s1134 = smul.addr %s1133, 8
    %s1135 = scalar_lea.vmem [#allocation2], %s1134
    %v1136 = vld [vmem:[%s1135] sm:$0xff]
    %v1137 = vld [vmem:[%s1135 + $0x8] sm:$0xff]
    %v1138 = vld [vmem:[%s1135 + $0x10] sm:$0xff]
    %v1139 = vpack.c.bf16 %v1132, %v1132
    %1140 = vmatprep.subr.bf16.mxu0 %v558
    %1141 = vmatpush1.bf16.msra.mxu0 %v557
    %1142 = vmatprep.subr.bf16.mxu0 %v555
    %1143 = vmatpush1.bf16.msra.mxu0 %v554
    %1144 = vmatprep.subr.bf16.mxu0 %v552
    %1145 = vmatpush1.bf16.msra.mxu0 %v551
    %1146 = vmatprep.subr.bf16.mxu0 %v549
    %1147 = vmatpush1.bf16.msra.mxu0 %v548
    %1148 = vmatprep.subr.bf16.mxu0 %v546
    %1149 = vmatpush1.bf16.msra.mxu0 %v545
    %1150 = vmatprep.subr.bf16.mxu0 %v543
    %1151 = vmatpush1.bf16.msra.mxu0 %v542
    %1152 = vmatprep.subr.bf16.mxu0 %v540
    %1153 = vmatpush1.bf16.msra.mxu0 %v539
    %1154 = vmatprep.subr.bf16.mxu0 %v537
    %1155 = vmatpush1.bf16.msra.mxu0 %v536
    %1156 = vmatprep.subr.bf16.mxu0 0
    %1157 = vmatpush2.bf16.msra.mxu0 0
    %1158 = vmatprep.subr.bf16.mxu0 0
    %1159 = vmatpush2.bf16.msra.mxu0 0
    %1160 = vmatprep.subr.bf16.mxu0 0
    %1161 = vmatpush2.bf16.msra.mxu0 0
    %1162 = vmatprep.subr.bf16.mxu0 0
    %1163 = vmatpush2.bf16.msra.mxu0 0
    %1164 = vmatprep.subr.bf16.mxu0 0
    %1165 = vmatpush2.bf16.msra.mxu0 0
    %1166 = vmatprep.subr.bf16.mxu0 0
    %1167 = vmatpush2.bf16.msra.mxu0 0
    %1168 = vmatprep.subr.bf16.mxu0 0
    %1169 = vmatpush2.bf16.msra.mxu0 0
    %1170 = vmatprep.subr.bf16.mxu0 0
    %1171 = vmatpush2.bf16.msra.mxu0 0
    %1172 = vmatprep.mubr.bf16.mxu0 0
    %1173 = vmatmul.mubr.bf16.gmra.mxu0 %v1139
    %v1174 = vpop.f32.mrf.mxu0
    %v1175 = vadd.f32 0.0, %v1174
    %v1176 = vpop.f32.mrf.mxu0
    %v1177 = vadd.f32 0.0, %v1176
    %v1178 = vpop.f32.mrf.mxu0
    %v1179 = vpop.f32.mrf.mxu0
    %1180 = vdwg.mxu0
    %1181 = vmatprep.subr.bf16.mxu0 0
    %1182 = vmatpush1.bf16.msra.mxu0 %v559
    %1183 = vmatprep.subr.bf16.mxu0 0
    %1184 = vmatpush1.bf16.msra.mxu0 %v556
    %1185 = vmatprep.subr.bf16.mxu0 0
    %1186 = vmatpush1.bf16.msra.mxu0 %v553
    %1187 = vmatprep.subr.bf16.mxu0 0
    %1188 = vmatpush1.bf16.msra.mxu0 %v550
    %1189 = vmatprep.subr.bf16.mxu0 0
    %1190 = vmatpush1.bf16.msra.mxu0 %v547
    %1191 = vmatprep.subr.bf16.mxu0 0
    %1192 = vmatpush1.bf16.msra.mxu0 %v544
    %1193 = vmatprep.subr.bf16.mxu0 0
    %1194 = vmatpush1.bf16.msra.mxu0 %v541
    %1195 = vmatprep.subr.bf16.mxu0 0
    %1196 = vmatpush1.bf16.msra.mxu0 %v538
    %1197 = vmatprep.subr.bf16.mxu0 0
    %1198 = vmatpush2.bf16.msra.mxu0 0
    %1199 = vmatprep.subr.bf16.mxu0 0
    %1200 = vmatpush2.bf16.msra.mxu0 0
    %1201 = vmatprep.subr.bf16.mxu0 0
    %1202 = vmatpush2.bf16.msra.mxu0 0
    %1203 = vmatprep.subr.bf16.mxu0 0
    %1204 = vmatpush2.bf16.msra.mxu0 0
    %1205 = vmatprep.subr.bf16.mxu0 0
    %1206 = vmatpush2.bf16.msra.mxu0 0
    %1207 = vmatprep.subr.bf16.mxu0 0
    %1208 = vmatpush2.bf16.msra.mxu0 0
    %1209 = vmatprep.subr.bf16.mxu0 0
    %1210 = vmatpush2.bf16.msra.mxu0 0
    %1211 = vmatprep.subr.bf16.mxu0 0
    %1212 = vmatpush2.bf16.msra.mxu0 0
    %1213 = vmatprep.mubr.bf16.mxu0 0
    %1214 = vmatmul.mubr.bf16.gmra.mxu0 %v1139
    %v1215 = vpop.f32.mrf.mxu0
    %v1216 = vadd.f32 0.0, %v1215
    %v1217 = vpop.f32.mrf.mxu0
    %v1218 = vpop.f32.mrf.mxu0
    %v1219 = vpop.f32.mrf.mxu0
    %1220 = vdwg.mxu0
    %v1221 = vadd.f32 %v1136, %v1175
    %v1222 = vxor.u32 %v1221, 2147483648
    %v1223 = vmul.f32 %v1222, 1.442695
    %v1224 = vpow.pop %v1223
    %v1225 = vadd.f32 %v1224, 1.0
    %v1226 = vrcp.pop %v1225
    %v1227 = vmul.f32 1.0, %v1226
    %v1228 = vadd.f32 %v1137, %v1177
    %v1229 = vxor.u32 %v1228, 2147483648
    %v1230 = vmul.f32 %v1229, 1.442695
    %v1231 = vpow.pop %v1230
    %v1232 = vadd.f32 %v1231, 1.0
    %v1233 = vrcp.pop %v1232
    %v1234 = vmul.f32 1.0, %v1233
    %v1235 = vadd.f32 %v1216, %v683
    %v1236 = vmul.f32 %v1227, %v1235
    %v1237 = vadd.f32 %v1138, %v1236
    %v1238 = vtanh.pop %v1237
    %v1239 = vsub.f32 1.0, %v1234
    %v1240 = vmul.f32 %v1239, %v1238
    %v1241 = vmul.f32 %v1234, %v1132
    %v1242 = vadd.f32 %v1240, %v1241
    %s1243 = smul.u32 6, 3
    %s1244 = smul.addr %s1243, 8
    %s1245 = scalar_lea.vmem [#allocation2], %s1244
    %v1246 = vld [vmem:[%s1245] sm:$0xff]
    %v1247 = vld [vmem:[%s1245 + $0x8] sm:$0xff]
    %v1248 = vld [vmem:[%s1245 + $0x10] sm:$0xff]
    %v1249 = vpack.c.bf16 %v1242, %v1242
    %1250 = vmatprep.subr.bf16.mxu0 %v558
    %1251 = vmatpush1.bf16.msra.mxu0 %v557
    %1252 = vmatprep.subr.bf16.mxu0 %v555
    %1253 = vmatpush1.bf16.msra.mxu0 %v554
    %1254 = vmatprep.subr.bf16.mxu0 %v552
    %1255 = vmatpush1.bf16.msra.mxu0 %v551
    %1256 = vmatprep.subr.bf16.mxu0 %v549
    %1257 = vmatpush1.bf16.msra.mxu0 %v548
    %1258 = vmatprep.subr.bf16.mxu0 %v546
    %1259 = vmatpush1.bf16.msra.mxu0 %v545
    %1260 = vmatprep.subr.bf16.mxu0 %v543
    %1261 = vmatpush1.bf16.msra.mxu0 %v542
    %1262 = vmatprep.subr.bf16.mxu0 %v540
    %1263 = vmatpush1.bf16.msra.mxu0 %v539
    %1264 = vmatprep.subr.bf16.mxu0 %v537
    %1265 = vmatpush1.bf16.msra.mxu0 %v536
    %1266 = vmatprep.subr.bf16.mxu0 0
    %1267 = vmatpush2.bf16.msra.mxu0 0
    %1268 = vmatprep.subr.bf16.mxu0 0
    %1269 = vmatpush2.bf16.msra.mxu0 0
    %1270 = vmatprep.subr.bf16.mxu0 0
    %1271 = vmatpush2.bf16.msra.mxu0 0
    %1272 = vmatprep.subr.bf16.mxu0 0
    %1273 = vmatpush2.bf16.msra.mxu0 0
    %1274 = vmatprep.subr.bf16.mxu0 0
    %1275 = vmatpush2.bf16.msra.mxu0 0
    %1276 = vmatprep.subr.bf16.mxu0 0
    %1277 = vmatpush2.bf16.msra.mxu0 0
    %1278 = vmatprep.subr.bf16.mxu0 0
    %1279 = vmatpush2.bf16.msra.mxu0 0
    %1280 = vmatprep.subr.bf16.mxu0 0
    %1281 = vmatpush2.bf16.msra.mxu0 0
    %1282 = vmatprep.mubr.bf16.mxu0 0
    %1283 = vmatmul.mubr.bf16.gmra.mxu0 %v1249
    %v1284 = vpop.f32.mrf.mxu0
    %v1285 = vadd.f32 0.0, %v1284
    %v1286 = vpop.f32.mrf.mxu0
    %v1287 = vadd.f32 0.0, %v1286
    %v1288 = vpop.f32.mrf.mxu0
    %v1289 = vpop.f32.mrf.mxu0
    %1290 = vdwg.mxu0
    %1291 = vmatprep.subr.bf16.mxu0 0
    %1292 = vmatpush1.bf16.msra.mxu0 %v559
    %1293 = vmatprep.subr.bf16.mxu0 0
    %1294 = vmatpush1.bf16.msra.mxu0 %v556
    %1295 = vmatprep.subr.bf16.mxu0 0
    %1296 = vmatpush1.bf16.msra.mxu0 %v553
    %1297 = vmatprep.subr.bf16.mxu0 0
    %1298 = vmatpush1.bf16.msra.mxu0 %v550
    %1299 = vmatprep.subr.bf16.mxu0 0
    %1300 = vmatpush1.bf16.msra.mxu0 %v547
    %1301 = vmatprep.subr.bf16.mxu0 0
    %1302 = vmatpush1.bf16.msra.mxu0 %v544
    %1303 = vmatprep.subr.bf16.mxu0 0
    %1304 = vmatpush1.bf16.msra.mxu0 %v541
    %1305 = vmatprep.subr.bf16.mxu0 0
    %1306 = vmatpush1.bf16.msra.mxu0 %v538
    %1307 = vmatprep.subr.bf16.mxu0 0
    %1308 = vmatpush2.bf16.msra.mxu0 0
    %1309 = vmatprep.subr.bf16.mxu0 0
    %1310 = vmatpush2.bf16.msra.mxu0 0
    %1311 = vmatprep.subr.bf16.mxu0 0
    %1312 = vmatpush2.bf16.msra.mxu0 0
    %1313 = vmatprep.subr.bf16.mxu0 0
    %1314 = vmatpush2.bf16.msra.mxu0 0
    %1315 = vmatprep.subr.bf16.mxu0 0
    %1316 = vmatpush2.bf16.msra.mxu0 0
    %1317 = vmatprep.subr.bf16.mxu0 0
    %1318 = vmatpush2.bf16.msra.mxu0 0
    %1319 = vmatprep.subr.bf16.mxu0 0
    %1320 = vmatpush2.bf16.msra.mxu0 0
    %1321 = vmatprep.subr.bf16.mxu0 0
    %1322 = vmatpush2.bf16.msra.mxu0 0
    %1323 = vmatprep.mubr.bf16.mxu0 0
    %1324 = vmatmul.mubr.bf16.gmra.mxu0 %v1249
    %v1325 = vpop.f32.mrf.mxu0
    %v1326 = vadd.f32 0.0, %v1325
    %v1327 = vpop.f32.mrf.mxu0
    %v1328 = vpop.f32.mrf.mxu0
    %v1329 = vpop.f32.mrf.mxu0
    %1330 = vdwg.mxu0
    %v1331 = vadd.f32 %v1246, %v1285
    %v1332 = vxor.u32 %v1331, 2147483648
    %v1333 = vmul.f32 %v1332, 1.442695
    %v1334 = vpow.pop %v1333
    %v1335 = vadd.f32 %v1334, 1.0
    %v1336 = vrcp.pop %v1335
    %v1337 = vmul.f32 1.0, %v1336
    %v1338 = vadd.f32 %v1247, %v1287
    %v1339 = vxor.u32 %v1338, 2147483648
    %v1340 = vmul.f32 %v1339, 1.442695
    %v1341 = vpow.pop %v1340
    %v1342 = vadd.f32 %v1341, 1.0
    %v1343 = vrcp.pop %v1342
    %v1344 = vmul.f32 1.0, %v1343
    %v1345 = vadd.f32 %v1326, %v683
    %v1346 = vmul.f32 %v1337, %v1345
    %v1347 = vadd.f32 %v1248, %v1346
    %v1348 = vtanh.pop %v1347
    %v1349 = vsub.f32 1.0, %v1344
    %v1350 = vmul.f32 %v1349, %v1348
    %v1351 = vmul.f32 %v1344, %v1242
    %v1352 = vadd.f32 %v1350, %v1351
    %s1353 = smul.u32 7, 3
    %s1354 = smul.addr %s1353, 8
    %s1355 = scalar_lea.vmem [#allocation2], %s1354
    %v1356 = vld [vmem:[%s1355] sm:$0xff]
    %v1357 = vld [vmem:[%s1355 + $0x8] sm:$0xff]
    %v1358 = vld [vmem:[%s1355 + $0x10] sm:$0xff]
    %v1359 = vpack.c.bf16 %v1352, %v1352
    %1360 = vmatprep.subr.bf16.mxu0 %v558
    %1361 = vmatpush1.bf16.msra.mxu0 %v557
    %1362 = vmatprep.subr.bf16.mxu0 %v555
    %1363 = vmatpush1.bf16.msra.mxu0 %v554
    %1364 = vmatprep.subr.bf16.mxu0 %v552
    %1365 = vmatpush1.bf16.msra.mxu0 %v551
    %1366 = vmatprep.subr.bf16.mxu0 %v549
    %1367 = vmatpush1.bf16.msra.mxu0 %v548
    %1368 = vmatprep.subr.bf16.mxu0 %v546
    %1369 = vmatpush1.bf16.msra.mxu0 %v545
    %1370 = vmatprep.subr.bf16.mxu0 %v543
    %1371 = vmatpush1.bf16.msra.mxu0 %v542
    %1372 = vmatprep.subr.bf16.mxu0 %v540
    %1373 = vmatpush1.bf16.msra.mxu0 %v539
    %1374 = vmatprep.subr.bf16.mxu0 %v537
    %1375 = vmatpush1.bf16.msra.mxu0 %v536
    %1376 = vmatprep.subr.bf16.mxu0 0
    %1377 = vmatpush2.bf16.msra.mxu0 0
    %1378 = vmatprep.subr.bf16.mxu0 0
    %1379 = vmatpush2.bf16.msra.mxu0 0
    %1380 = vmatprep.subr.bf16.mxu0 0
    %1381 = vmatpush2.bf16.msra.mxu0 0
    %1382 = vmatprep.subr.bf16.mxu0 0
    %1383 = vmatpush2.bf16.msra.mxu0 0
    %1384 = vmatprep.subr.bf16.mxu0 0
    %1385 = vmatpush2.bf16.msra.mxu0 0
    %1386 = vmatprep.subr.bf16.mxu0 0
    %1387 = vmatpush2.bf16.msra.mxu0 0
    %1388 = vmatprep.subr.bf16.mxu0 0
    %1389 = vmatpush2.bf16.msra.mxu0 0
    %1390 = vmatprep.subr.bf16.mxu0 0
    %1391 = vmatpush2.bf16.msra.mxu0 0
    %1392 = vmatprep.mubr.bf16.mxu0 0
    %1393 = vmatmul.mubr.bf16.gmra.mxu0 %v1359
    %v1394 = vpop.f32.mrf.mxu0
    %v1395 = vadd.f32 0.0, %v1394
    %v1396 = vpop.f32.mrf.mxu0
    %v1397 = vadd.f32 0.0, %v1396
    %v1398 = vpop.f32.mrf.mxu0
    %v1399 = vpop.f32.mrf.mxu0
    %1400 = vdwg.mxu0
    %1401 = vmatprep.subr.bf16.mxu0 0
    %1402 = vmatpush1.bf16.msra.mxu0 %v559
    %1403 = vmatprep.subr.bf16.mxu0 0
    %1404 = vmatpush1.bf16.msra.mxu0 %v556
    %1405 = vmatprep.subr.bf16.mxu0 0
    %1406 = vmatpush1.bf16.msra.mxu0 %v553
    %1407 = vmatprep.subr.bf16.mxu0 0
    %1408 = vmatpush1.bf16.msra.mxu0 %v550
    %1409 = vmatprep.subr.bf16.mxu0 0
    %1410 = vmatpush1.bf16.msra.mxu0 %v547
    %1411 = vmatprep.subr.bf16.mxu0 0
    %1412 = vmatpush1.bf16.msra.mxu0 %v544
    %1413 = vmatprep.subr.bf16.mxu0 0
    %1414 = vmatpush1.bf16.msra.mxu0 %v541
    %1415 = vmatprep.subr.bf16.mxu0 0
    %1416 = vmatpush1.bf16.msra.mxu0 %v538
    %1417 = vmatprep.subr.bf16.mxu0 0
    %1418 = vmatpush2.bf16.msra.mxu0 0
    %1419 = vmatprep.subr.bf16.mxu0 0
    %1420 = vmatpush2.bf16.msra.mxu0 0
    %1421 = vmatprep.subr.bf16.mxu0 0
    %1422 = vmatpush2.bf16.msra.mxu0 0
    %1423 = vmatprep.subr.bf16.mxu0 0
    %1424 = vmatpush2.bf16.msra.mxu0 0
    %1425 = vmatprep.subr.bf16.mxu0 0
    %1426 = vmatpush2.bf16.msra.mxu0 0
    %1427 = vmatprep.subr.bf16.mxu0 0
    %1428 = vmatpush2.bf16.msra.mxu0 0
    %1429 = vmatprep.subr.bf16.mxu0 0
    %1430 = vmatpush2.bf16.msra.mxu0 0
    %1431 = vmatprep.subr.bf16.mxu0 0
    %1432 = vmatpush2.bf16.msra.mxu0 0
    %1433 = vmatprep.mubr.bf16.mxu0 0
    %1434 = vmatmul.mubr.bf16.gmra.mxu0 %v1359
    %v1435 = vpop.f32.mrf.mxu0
    %v1436 = vadd.f32 0.0, %v1435
    %v1437 = vpop.f32.mrf.mxu0
    %v1438 = vpop.f32.mrf.mxu0
    %v1439 = vpop.f32.mrf.mxu0
    %1440 = vdwg.mxu0
    %v1441 = vadd.f32 %v1356, %v1395
    %v1442 = vxor.u32 %v1441, 2147483648
    %v1443 = vmul.f32 %v1442, 1.442695
    %v1444 = vpow.pop %v1443
    %v1445 = vadd.f32 %v1444, 1.0
    %v1446 = vrcp.pop %v1445
    %v1447 = vmul.f32 1.0, %v1446
    %v1448 = vadd.f32 %v1357, %v1397
    %v1449 = vxor.u32 %v1448, 2147483648
    %v1450 = vmul.f32 %v1449, 1.442695
    %v1451 = vpow.pop %v1450
    %v1452 = vadd.f32 %v1451, 1.0
    %v1453 = vrcp.pop %v1452
    %v1454 = vmul.f32 1.0, %v1453
    %v1455 = vadd.f32 %v1436, %v683
    %v1456 = vmul.f32 %v1447, %v1455
    %v1457 = vadd.f32 %v1358, %v1456
    %v1458 = vtanh.pop %v1457
    %v1459 = vsub.f32 1.0, %v1454
    %v1460 = vmul.f32 %v1459, %v1458
    %v1461 = vmul.f32 %v1454, %v1352
    %v1462 = vadd.f32 %v1460, %v1461
    %v1463 = vpack.c.bf16 %v1462, %v1462
    %v1464 = vld [vmem:[%s6] sm:$0xf]
    %v1465 = vld [vmem:[%s6 + $0x4] sm:$0xf]
    %v1466 = vld [vmem:[%s6 + $0x8] sm:$0xf]
    %v1467 = vld [vmem:[%s6 + $0xc] sm:$0xf]
    %v1468 = vld [vmem:[%s6 + $0x10] sm:$0xf]
    %v1469 = vld [vmem:[%s6 + $0x14] sm:$0xf]
    %v1470 = vld [vmem:[%s6 + $0x18] sm:$0xf]
    %v1471 = vld [vmem:[%s6 + $0x1c] sm:$0xf]
    %v1472 = vld [vmem:[%s6 + $0x20] sm:$0xf]
    %v1473 = vld [vmem:[%s6 + $0x24] sm:$0xf]
    %v1474 = vld [vmem:[%s6 + $0x28] sm:$0xf]
    %v1475 = vld [vmem:[%s6 + $0x2c] sm:$0xf]
    %v1476 = vld [vmem:[%s6 + $0x30] sm:$0xf]
    %v1477 = vld [vmem:[%s6 + $0x34] sm:$0xf]
    %v1478 = vld [vmem:[%s6 + $0x38] sm:$0xf]
    %v1479 = vld [vmem:[%s6 + $0x3c] sm:$0xf]
    %v1480 = vld [vmem:[%s7] sm:$0x1]
    %v1482 = vlaneseq
    %v1483 = vshrl.u32 %v1482, 7
    %v1484 = vsub.s32 0, %v1483
    %v1485 = vrot.slane %v1480, %v1484
    %v1503 = vunpack.c.l.b16 %v1464
    %v1504 = vunpack.c.l.b16 %v1465
    %v1505 = vunpack.c.l.b16 %v1466
    %v1506 = vunpack.c.l.b16 %v1467
    %v1507 = vunpack.c.l.b16 %v1468
    %v1508 = vunpack.c.l.b16 %v1469
    %v1509 = vunpack.c.l.b16 %v1470
    %v1510 = vunpack.c.l.b16 %v1471
    %v1511 = vunpack.c.l.b16 %v1472
    %v1512 = vunpack.c.l.b16 %v1473
    %v1513 = vunpack.c.l.b16 %v1474
    %v1514 = vunpack.c.l.b16 %v1475
    %v1515 = vunpack.c.l.b16 %v1476
    %v1516 = vunpack.c.l.b16 %v1477
    %v1517 = vunpack.c.l.b16 %v1478
    %v1518 = vunpack.c.l.b16 %v1479
    %v1519 = vpack.c.b16 %v1504, %v1503
    %v1520 = vpack.c.b16 %v1506, %v1505
    %v1521 = vpack.c.b16 %v1508, %v1507
    %v1522 = vpack.c.b16 %v1510, %v1509
    %v1523 = vpack.c.b16 %v1512, %v1511
    %v1524 = vpack.c.b16 %v1514, %v1513
    %v1525 = vpack.c.b16 %v1516, %v1515
    %v1526 = vpack.c.b16 %v1518, %v1517
    %1535 = vmatprep.subr.bf16.mxu0 0
    %1536 = vmatpush1.bf16.msra.mxu0 %v1526
    %1537 = vmatprep.subr.bf16.mxu0 0
    %1538 = vmatpush1.bf16.msra.mxu0 %v1525
    %1539 = vmatprep.subr.bf16.mxu0 0
    %1540 = vmatpush1.bf16.msra.mxu0 %v1524
    %1541 = vmatprep.subr.bf16.mxu0 0
    %1542 = vmatpush1.bf16.msra.mxu0 %v1523
    %1543 = vmatprep.subr.bf16.mxu0 0
    %1544 = vmatpush1.bf16.msra.mxu0 %v1522
    %1545 = vmatprep.subr.bf16.mxu0 0
    %1546 = vmatpush1.bf16.msra.mxu0 %v1521
    %1547 = vmatprep.subr.bf16.mxu0 0
    %1548 = vmatpush1.bf16.msra.mxu0 %v1520
    %1549 = vmatprep.subr.bf16.mxu0 0
    %1550 = vmatpush1.bf16.msra.mxu0 %v1519
    %1551 = vmatprep.subr.bf16.mxu0 0
    %1552 = vmatpush2.bf16.msra.mxu0 0
    %1553 = vmatprep.subr.bf16.mxu0 0
    %1554 = vmatpush2.bf16.msra.mxu0 0
    %1555 = vmatprep.subr.bf16.mxu0 0
    %1556 = vmatpush2.bf16.msra.mxu0 0
    %1557 = vmatprep.subr.bf16.mxu0 0
    %1558 = vmatpush2.bf16.msra.mxu0 0
    %1559 = vmatprep.subr.bf16.mxu0 0
    %1560 = vmatpush2.bf16.msra.mxu0 0
    %1561 = vmatprep.subr.bf16.mxu0 0
    %1562 = vmatpush2.bf16.msra.mxu0 0
    %1563 = vmatprep.subr.bf16.mxu0 0
    %1564 = vmatpush2.bf16.msra.mxu0 0
    %1565 = vmatprep.subr.bf16.mxu0 0
    %1566 = vmatpush2.bf16.msra.mxu0 0
    %1567 = vmatprep.mubr.bf16.mxu0 0
    %1568 = vmatmul.mubr.bf16.gmra.mxu0 %v1463
    %v1569 = vpop.f32.mrf.mxu0
    %v1570 = vadd.f32 %v1485, %v1569
    %v1571 = vpop.f32.mrf.mxu0
    %v1572 = vpop.f32.mrf.mxu0
    %v1573 = vpop.f32.mrf.mxu0
    %1574 = vdwg.mxu0
    %1575 = vst [vmem:[#allocation6] sm:$0xff] %v1570
    // Predicated region
    $region38: #{tpu_custom_call.1} parent=1 // pred_check
      _
    $region39: #{tpu_custom_call.1} parent=1 // pred_check_branch
      %1577 = sbr.rel (0) target = $region41
    $region40: #{tpu_custom_call.1} parent=1 // pred_region
      %s1579 = ssub.s32 128, 128
      %1580 = vsyncadd [#allocation5], %s1579
      %s1582 = sshll.u32 [#allocation6], 4
      %s1583 = int_to_ptr.vmem [resolvable:$true] %s1582
      %1585 = dma.vmem_to_hbm [thread:$0]  %s1583, 128, %s8, [#allocation5]
    $region41: #{tpu_custom_call.1} parent=1 // pred_fallthru
      _
    // Predicated region
    $region42: #{tpu_custom_call.1} parent=1 // pred_check
      _
    $region43: #{tpu_custom_call.1} parent=1 // pred_check_branch
      %1587 = sbr.rel (0) target = $region45
    $region44: #{tpu_custom_call.1} parent=1 // pred_region
      %1588 = dma.done [#allocation5], 128
    $region45: #{tpu_custom_call.1} parent=1 // pred_fallthru
      _
    %1589 = vsyncpa [#allocation4], 1
    %1590 = vsyncpa [#allocation5], 1

</llo_original>
